<compile_context>
chip_gen: v7x
topology: tpu7x:2x2x1
jax: 0.10.0
libtpu: 0.0.40
codegen_flags: <defaults>
</compile_context>

<pallas_src>
import jax
import jax.numpy as jnp
from jax.experimental import pallas as pl
from jax.experimental.pallas import tpu as pltpu


def _round_up(x, m):
    return ((x + m - 1) // m) * m


def _make_kernel(num_layers, seq_len, batch_tile, hidden, word_embed, embed_out,
                 matmul_dtype):
    H = hidden
    BT = batch_tile
    f32 = jnp.float32

    def kernel(*refs):
        x_ref = refs[0]                                   # (S, BT, E) f32
        idx = 1
        layer_refs = []
        for _ in range(num_layers):
            layer_refs.append(refs[idx:idx + 3])          # W_ih (in,4H), W_hh (H,4H), b (1,4H)
            idx += 3
        fcw_ref = refs[idx]                               # (2*L*H, embed)
        fcb_ref = refs[idx + 1]                           # (1, embed)
        out_ref = refs[idx + 2]                           # (BT, embed)

        feat_parts = []
        # Layer-0 input: tanh(embedding) for all timesteps, flattened to a
        # single sublane-dense (S*BT, E) operand for the hoisted projection.
        xin2 = jnp.tanh(x_ref[...]).reshape(seq_len * BT, word_embed)

        for l in range(num_layers):
            wih_ref, whh_ref, b_ref = layer_refs[l]

            # ---- hoisted input projection for ALL timesteps: one lane-dense
            # (S*BT, k_in) x (k_in, 4H) matmul + bias (b_ih + b_hh).
            proj = jnp.dot(xin2.astype(matmul_dtype), wih_ref[...],
                           preferred_element_type=f32) + b_ref[...]   # (S*BT, 4H)

            w_hh = whh_ref[...]                           # (H, 4H) f32, hoisted load

            # ---- serial recurrence.  Only h_prev @ W_hh + elementwise is on the
            # critical path; h/c and the per-step outputs stay in registers.
            h = jnp.zeros((BT, H), f32)
            c = jnp.zeros((BT, H), f32)
            last_layer = (l == num_layers - 1)
            hs = []
            for t in range(seq_len):                      # static unroll (S small)
                gates = proj[t * BT:(t + 1) * BT, :] + jnp.dot(
                    h, w_hh, preferred_element_type=f32)  # (BT, 4H), f32 MXU
                # fused gate columns are ordered [i, f, o, g] (host reorder):
                sig = jax.nn.sigmoid(gates)               # one full-vreg EUP push
                i_g = sig[:, 0 * H:1 * H]
                f_g = sig[:, 1 * H:2 * H]
                o_g = sig[:, 2 * H:3 * H]
                g_g = jnp.tanh(gates[:, 3 * H:4 * H])
                c = f_g * c + i_g * g_g
                h = o_g * jnp.tanh(c)
                if not last_layer:
                    hs.append(h)                          # feeds next layer's projection

            if not last_layer:
                # Next layer's hoisted-projection operand: bulk concat along the
                # sublane axis (no per-step VMEM stores).
                xin2 = jnp.concatenate(hs, axis=0)        # (S*BT, H)

            feat_parts.append(jnp.tanh(h))
            feat_parts.append(jnp.tanh(c))

        # torch layout per row: [h_0, c_0, h_1, c_1, ...]; single fc matmul K=2LH.
        feat = jnp.concatenate(feat_parts, axis=1)        # (BT, 2*L*H)
        out = jnp.dot(feat.astype(matmul_dtype), fcw_ref[...],
                      preferred_element_type=f32) + fcb_ref[...]
        out_ref[...] = out.astype(out_ref.dtype)

    return kernel


def _reorder_gate_rows(w, H):
    """Torch LSTM gate order along the 4H axis is [i, f, g, o]; return [i, f, o, g]."""
    return jnp.concatenate([w[0:H], w[H:2 * H], w[3 * H:4 * H], w[2 * H:3 * H]],
                           axis=0)


def qst_encoder_forward(question, params, *, num_layers, hidden_size,
                        matmul_dtype=jnp.float32, batch_tile=None):
    emb = params["embedding"]                                 # (V, E)
    x = jnp.take(emb, question, axis=0)                       # (B, S, E) gather glue
    x = jnp.transpose(x, (1, 0, 2)).astype(jnp.float32)       # (S, B, E) time-major
    S, B, E = x.shape
    H = hidden_size
    embed_size = params["fc_w"].shape[0]
    use_bf16 = jnp.dtype(matmul_dtype) == jnp.dtype(jnp.bfloat16)

    # ---- batch tiling: grow BT (MXU rows / sublanes) before adding grid tiles.
    # bf16 vregs are (16,128), so bf16 operands want BT >= 16; f32 wants >= 8.
    if batch_tile is None:
        min_bt = 16 if use_bf16 else 8
        BT = max(min_bt, min(128, _round_up(B, min_bt)))
    else:
        BT = batch_tile
    padded_B = _round_up(B, BT)
    if padded_B != B:
        x = jnp.pad(x, ((0, 0), (0, padded_B - B), (0, 0)))
    num_btiles = padded_B // BT

    inputs = [x]
    in_specs = [pl.BlockSpec((S, BT, E), lambda b: (0, b, 0))]

    def _replicated_spec(shape):
        n = len(shape)
        return pl.BlockSpec(shape, lambda b, _n=n: (0,) * _n)

    for l in range(num_layers):
        # Fused gate weights, host-reordered to [i, f, o, g] and transposed so
        # the kernel matmuls are (., 4H) lane-dense.
        w_ih = jnp.asarray(_reorder_gate_rows(params["w_ih"][l], H).T, matmul_dtype)
        # Recurrence stays f32 (serial-latency bound; no per-step cast).
        w_hh = jnp.asarray(_reorder_gate_rows(params["w_hh"][l], H).T, jnp.float32)
        b = jnp.asarray(
            _reorder_gate_rows(params["b_ih"][l] + params["b_hh"][l], H).reshape(1, 4 * H),
            jnp.float32)
        inputs += [w_ih, w_hh, b]
        in_specs += [_replicated_spec(w_ih.shape),
                     _replicated_spec(w_hh.shape),
                     _replicated_spec(b.shape)]

    fc_w = jnp.asarray(params["fc_w"].T, matmul_dtype)         # (2*L*H, embed)
    fc_b = jnp.asarray(params["fc_b"].reshape(1, embed_size), jnp.float32)
    inputs += [fc_w, fc_b]
    in_specs += [_replicated_spec(fc_w.shape), _replicated_spec(fc_b.shape)]

    kernel = _make_kernel(num_layers, S, BT, H, E, embed_size, matmul_dtype)

    out_padded = pl.pallas_call(
        kernel,
        out_shape=jax.ShapeDtypeStruct((padded_B, embed_size), jnp.float32),
        grid_spec=pltpu.PrefetchScalarGridSpec(
            num_scalar_prefetch=0,
            grid=(num_btiles,),
            in_specs=in_specs,
            out_specs=pl.BlockSpec((BT, embed_size), lambda b: (b, 0)),
            scratch_shapes=[]),                     # all loop state lives in registers
        compiler_params=pltpu.CompilerParams(
            # batch tiles are independent -> megacore-parallel when num_btiles >= 2
            dimension_semantics=("parallel",),
            vmem_limit_bytes=32 * 1024 * 1024,
        ),
    )(*inputs)
    return out_padded[:B]


def reference_forward(question, params, *, num_layers, hidden_size):
    """Pure-JAX reference mirroring the PyTorch forward semantics."""
    emb = params["embedding"]
    x = jnp.tanh(jnp.take(emb, question, axis=0))            # (B, S, E)
    x = jnp.transpose(x, (1, 0, 2))                          # (S, B, E)
    S, B, _ = x.shape
    H = hidden_size
    hs, cs = [], []
    layer_in = x
    for l in range(num_layers):
        w_ih = params["w_ih"][l]
        w_hh = params["w_hh"][l]
        b = params["b_ih"][l] + params["b_hh"][l]
        h = jnp.zeros((B, H), jnp.float32)
        c = jnp.zeros((B, H), jnp.float32)
        outs = []
        for t in range(S):
            gates = layer_in[t] @ w_ih.T + h @ w_hh.T + b
            i = jax.nn.sigmoid(gates[:, 0:H])
            f = jax.nn.sigmoid(gates[:, H:2 * H])
            g = jnp.tanh(gates[:, 2 * H:3 * H])
            o = jax.nn.sigmoid(gates[:, 3 * H:4 * H])
            c = f * c + i * g
            h = o * jnp.tanh(c)
            outs.append(h)
        layer_in = jnp.stack(outs, axis=0)
        hs.append(h)
        cs.append(c)
    feat = jnp.concatenate(
        [jnp.concatenate([hs[l], cs[l]], axis=1) for l in range(num_layers)], axis=1)
    feat = jnp.tanh(feat)
    return feat @ params["fc_w"].T + params["fc_b"]


def init_params(key, vocab, word_embed, embed_size, num_layers, hidden):
    keys = jax.random.split(key, 3 + 4 * num_layers)
    k = 1.0 / jnp.sqrt(hidden)
    params = {
        "embedding": jax.random.normal(keys[0], (vocab, word_embed), jnp.float32),
        "fc_w": jax.random.uniform(keys[1], (embed_size, 2 * num_layers * hidden),
                                   jnp.float32, -k, k),
        "fc_b": jax.random.uniform(keys[2], (embed_size,), jnp.float32, -k, k),
        "w_ih": [], "w_hh": [], "b_ih": [], "b_hh": [],
    }
    for l in range(num_layers):
        in_dim = word_embed if l == 0 else hidden
        kk = keys[3 + 4 * l: 3 + 4 * (l + 1)]
        params["w_ih"].append(jax.random.uniform(kk[0], (4 * hidden, in_dim),
                                                 jnp.float32, -k, k))
        params["w_hh"].append(jax.random.uniform(kk[1], (4 * hidden, hidden),
                                                 jnp.float32, -k, k))
        params["b_ih"].append(jax.random.uniform(kk[2], (4 * hidden,),
                                                 jnp.float32, -k, k))
        params["b_hh"].append(jax.random.uniform(kk[3], (4 * hidden,),
                                                 jnp.float32, -k, k))
    return params


if __name__ == "__main__":
    qst_vocab_size = 50
    word_embed_size = 32
    embed_size = 32
    num_layers = 2
    hidden_size = 32
    batch, seq_len = 2, 8

    root = jax.random.PRNGKey(0)
    kp, kq = jax.random.split(root)
    params = init_params(kp, qst_vocab_size, word_embed_size, embed_size,
                         num_layers, hidden_size)
    question = jax.random.randint(kq, (batch, seq_len), 0, qst_vocab_size,
                                  dtype=jnp.int32)

    ref = reference_forward(question, params,
                            num_layers=num_layers, hidden_size=hidden_size)

    # f32 operand path (exact; the v5e default — 4H = 128 already fills its MXU).
    out = qst_encoder_forward(question, params,
                              num_layers=num_layers, hidden_size=hidden_size)
    out = jax.block_until_ready(out)
    assert out.shape == (batch, embed_size)
    assert jnp.allclose(out, ref, atol=1e-4, rtol=1e-4), "f32 kernel mismatch vs reference"

    # bf16 operands for the hoisted projection / fc only (v6e/v7x MXU rate);
    # the recurrence matmul and all state stay f32, so drift stays small.
    out_bf16 = qst_encoder_forward(question, params,
                                   num_layers=num_layers, hidden_size=hidden_size,
                                   matmul_dtype=jnp.bfloat16)
    out_bf16 = jax.block_until_ready(out_bf16)
    assert jnp.allclose(out_bf16, ref, atol=5e-2, rtol=5e-2), "bf16-operand kernel drifted"

    print("KERNEL_OK")
</pallas_src>

<mosaic_0001>
module attributes {stable_mosaic.version = 11 : i64} {
  func.func @kernel(%arg0: i32, %arg1: memref<8x8x32xf32, #tpu.memory_space<vmem>>, %arg2: memref<32x128xf32, #tpu.memory_space<vmem>>, %arg3: memref<32x128xf32, #tpu.memory_space<vmem>>, %arg4: memref<1x128xf32, #tpu.memory_space<vmem>>, %arg5: memref<32x128xf32, #tpu.memory_space<vmem>>, %arg6: memref<32x128xf32, #tpu.memory_space<vmem>>, %arg7: memref<1x128xf32, #tpu.memory_space<vmem>>, %arg8: memref<128x32xf32, #tpu.memory_space<vmem>>, %arg9: memref<1x32xf32, #tpu.memory_space<vmem>>, %arg10: memref<8x32xf32, #tpu.memory_space<vmem>>) attributes {dimension_semantics = [#tpu.dimension_semantics<parallel>], iteration_bounds = array<i64: 1>, scalar_prefetch = 0 : i64, scratch_operands = 0 : i64, tpu.core_type = #tpu.core_type<tc>, window_params = [{transform_indices = @transform_0, window_bounds = array<i64: 8, 8, 32>}, {pipeline_mode = #tpu.pipeline_mode<synchronous>, transform_indices = @transform_1, window_bounds = array<i64: 32, 128>}, {pipeline_mode = #tpu.pipeline_mode<synchronous>, transform_indices = @transform_2, window_bounds = array<i64: 32, 128>}, {pipeline_mode = #tpu.pipeline_mode<synchronous>, transform_indices = @transform_3, window_bounds = array<i64: 1, 128>}, {pipeline_mode = #tpu.pipeline_mode<synchronous>, transform_indices = @transform_4, window_bounds = array<i64: 32, 128>}, {pipeline_mode = #tpu.pipeline_mode<synchronous>, transform_indices = @transform_5, window_bounds = array<i64: 32, 128>}, {pipeline_mode = #tpu.pipeline_mode<synchronous>, transform_indices = @transform_6, window_bounds = array<i64: 1, 128>}, {pipeline_mode = #tpu.pipeline_mode<synchronous>, transform_indices = @transform_7, window_bounds = array<i64: 128, 32>}, {pipeline_mode = #tpu.pipeline_mode<synchronous>, transform_indices = @transform_8, window_bounds = array<i64: 1, 32>}, {transform_indices = @transform_9, window_bounds = array<i64: 8, 32>}]} {
    %c0 = arith.constant 0 : index
    %c0_0 = arith.constant 0 : index
    %c0_1 = arith.constant 0 : index
    %0 = vector.load %arg1[%c0, %c0_0, %c0_1] : memref<8x8x32xf32, #tpu.memory_space<vmem>>, vector<8x8x32xf32>
    %1 = math.tanh %0 : vector<8x8x32xf32>
    %2 = vector.shape_cast %1 : vector<8x8x32xf32> to vector<64x32xf32>
    %c0_2 = arith.constant 0 : index
    %c0_3 = arith.constant 0 : index
    %3 = vector.load %arg2[%c0_2, %c0_3] : memref<32x128xf32, #tpu.memory_space<vmem>>, vector<32x128xf32>
    %cst = arith.constant dense<0.000000e+00> : vector<64x128xf32>
    %4 = tpu.matmul %2, %3, %cst {dimension_numbers = #tpu.dot_dimension_numbers<[1], [0], [0], [1], [0, 0, 1, 1], [], []>} : vector<64x32xf32>, vector<32x128xf32>, vector<64x128xf32> -> vector<64x128xf32>
    %c0_4 = arith.constant 0 : index
    %c0_5 = arith.constant 0 : index
    %5 = vector.load %arg4[%c0_4, %c0_5] : memref<1x128xf32, #tpu.memory_space<vmem>>, vector<1x128xf32>
    %6 = vector.broadcast %5 : vector<1x128xf32> to vector<64x128xf32>
    %7 = arith.addf %4, %6 : vector<64x128xf32>
    %c0_6 = arith.constant 0 : index
    %c0_7 = arith.constant 0 : index
    %8 = vector.load %arg3[%c0_6, %c0_7] : memref<32x128xf32, #tpu.memory_space<vmem>>, vector<32x128xf32>
    %cst_8 = arith.constant 0.000000e+00 : f32
    %9 = vector.broadcast %cst_8 : f32 to vector<8x32xf32>
    %cst_9 = arith.constant 0.000000e+00 : f32
    %10 = vector.broadcast %cst_9 : f32 to vector<8x32xf32>
    %11 = vector.extract_strided_slice %7 {offsets = [0, 0], sizes = [8, 128], strides = [1, 1]} : vector<64x128xf32> to vector<8x128xf32>
    %cst_10 = arith.constant dense<0.000000e+00> : vector<8x128xf32>
    %12 = tpu.matmul %9, %8, %cst_10 {dimension_numbers = #tpu.dot_dimension_numbers<[1], [0], [0], [1], [0, 0, 1, 1], [], []>} : vector<8x32xf32>, vector<32x128xf32>, vector<8x128xf32> -> vector<8x128xf32>
    %13 = arith.addf %11, %12 : vector<8x128xf32>
    %14 = arith.negf %13 : vector<8x128xf32>
    %15 = math.exp %14 : vector<8x128xf32>
    %cst_11 = arith.constant 1.000000e+00 : f32
    %16 = vector.broadcast %cst_11 : f32 to vector<8x128xf32>
    %17 = arith.addf %16, %15 : vector<8x128xf32>
    %18 = arith.divf %16, %17 : vector<8x128xf32>
    %19 = vector.extract_strided_slice %18 {offsets = [0, 0], sizes = [8, 32], strides = [1, 1]} : vector<8x128xf32> to vector<8x32xf32>
    %20 = vector.extract_strided_slice %18 {offsets = [0, 32], sizes = [8, 32], strides = [1, 1]} : vector<8x128xf32> to vector<8x32xf32>
    %21 = vector.extract_strided_slice %18 {offsets = [0, 64], sizes = [8, 32], strides = [1, 1]} : vector<8x128xf32> to vector<8x32xf32>
    %22 = vector.extract_strided_slice %13 {offsets = [0, 96], sizes = [8, 32], strides = [1, 1]} : vector<8x128xf32> to vector<8x32xf32>
    %23 = math.tanh %22 : vector<8x32xf32>
    %24 = arith.mulf %20, %10 : vector<8x32xf32>
    %25 = arith.mulf %19, %23 : vector<8x32xf32>
    %26 = arith.addf %24, %25 : vector<8x32xf32>
    %27 = math.tanh %26 : vector<8x32xf32>
    %28 = arith.mulf %21, %27 : vector<8x32xf32>
    %29 = vector.extract_strided_slice %7 {offsets = [8, 0], sizes = [8, 128], strides = [1, 1]} : vector<64x128xf32> to vector<8x128xf32>
    %cst_12 = arith.constant dense<0.000000e+00> : vector<8x128xf32>
    %30 = tpu.matmul %28, %8, %cst_12 {dimension_numbers = #tpu.dot_dimension_numbers<[1], [0], [0], [1], [0, 0, 1, 1], [], []>} : vector<8x32xf32>, vector<32x128xf32>, vector<8x128xf32> -> vector<8x128xf32>
    %31 = arith.addf %29, %30 : vector<8x128xf32>
    %32 = arith.negf %31 : vector<8x128xf32>
    %33 = math.exp %32 : vector<8x128xf32>
    %cst_13 = arith.constant 1.000000e+00 : f32
    %34 = vector.broadcast %cst_13 : f32 to vector<8x128xf32>
    %35 = arith.addf %34, %33 : vector<8x128xf32>
    %36 = arith.divf %34, %35 : vector<8x128xf32>
    %37 = vector.extract_strided_slice %36 {offsets = [0, 0], sizes = [8, 32], strides = [1, 1]} : vector<8x128xf32> to vector<8x32xf32>
    %38 = vector.extract_strided_slice %36 {offsets = [0, 32], sizes = [8, 32], strides = [1, 1]} : vector<8x128xf32> to vector<8x32xf32>
    %39 = vector.extract_strided_slice %36 {offsets = [0, 64], sizes = [8, 32], strides = [1, 1]} : vector<8x128xf32> to vector<8x32xf32>
    %40 = vector.extract_strided_slice %31 {offsets = [0, 96], sizes = [8, 32], strides = [1, 1]} : vector<8x128xf32> to vector<8x32xf32>
    %41 = math.tanh %40 : vector<8x32xf32>
    %42 = arith.mulf %38, %26 : vector<8x32xf32>
    %43 = arith.mulf %37, %41 : vector<8x32xf32>
    %44 = arith.addf %42, %43 : vector<8x32xf32>
    %45 = math.tanh %44 : vector<8x32xf32>
    %46 = arith.mulf %39, %45 : vector<8x32xf32>
    %47 = vector.extract_strided_slice %7 {offsets = [16, 0], sizes = [8, 128], strides = [1, 1]} : vector<64x128xf32> to vector<8x128xf32>
    %cst_14 = arith.constant dense<0.000000e+00> : vector<8x128xf32>
    %48 = tpu.matmul %46, %8, %cst_14 {dimension_numbers = #tpu.dot_dimension_numbers<[1], [0], [0], [1], [0, 0, 1, 1], [], []>} : vector<8x32xf32>, vector<32x128xf32>, vector<8x128xf32> -> vector<8x128xf32>
    %49 = arith.addf %47, %48 : vector<8x128xf32>
    %50 = arith.negf %49 : vector<8x128xf32>
    %51 = math.exp %50 : vector<8x128xf32>
    %cst_15 = arith.constant 1.000000e+00 : f32
    %52 = vector.broadcast %cst_15 : f32 to vector<8x128xf32>
    %53 = arith.addf %52, %51 : vector<8x128xf32>
    %54 = arith.divf %52, %53 : vector<8x128xf32>
    %55 = vector.extract_strided_slice %54 {offsets = [0, 0], sizes = [8, 32], strides = [1, 1]} : vector<8x128xf32> to vector<8x32xf32>
    %56 = vector.extract_strided_slice %54 {offsets = [0, 32], sizes = [8, 32], strides = [1, 1]} : vector<8x128xf32> to vector<8x32xf32>
    %57 = vector.extract_strided_slice %54 {offsets = [0, 64], sizes = [8, 32], strides = [1, 1]} : vector<8x128xf32> to vector<8x32xf32>
    %58 = vector.extract_strided_slice %49 {offsets = [0, 96], sizes = [8, 32], strides = [1, 1]} : vector<8x128xf32> to vector<8x32xf32>
    %59 = math.tanh %58 : vector<8x32xf32>
    %60 = arith.mulf %56, %44 : vector<8x32xf32>
    %61 = arith.mulf %55, %59 : vector<8x32xf32>
    %62 = arith.addf %60, %61 : vector<8x32xf32>
    %63 = math.tanh %62 : vector<8x32xf32>
    %64 = arith.mulf %57, %63 : vector<8x32xf32>
    %65 = vector.extract_strided_slice %7 {offsets = [24, 0], sizes = [8, 128], strides = [1, 1]} : vector<64x128xf32> to vector<8x128xf32>
    %cst_16 = arith.constant dense<0.000000e+00> : vector<8x128xf32>
    %66 = tpu.matmul %64, %8, %cst_16 {dimension_numbers = #tpu.dot_dimension_numbers<[1], [0], [0], [1], [0, 0, 1, 1], [], []>} : vector<8x32xf32>, vector<32x128xf32>, vector<8x128xf32> -> vector<8x128xf32>
    %67 = arith.addf %65, %66 : vector<8x128xf32>
    %68 = arith.negf %67 : vector<8x128xf32>
    %69 = math.exp %68 : vector<8x128xf32>
    %cst_17 = arith.constant 1.000000e+00 : f32
    %70 = vector.broadcast %cst_17 : f32 to vector<8x128xf32>
    %71 = arith.addf %70, %69 : vector<8x128xf32>
    %72 = arith.divf %70, %71 : vector<8x128xf32>
    %73 = vector.extract_strided_slice %72 {offsets = [0, 0], sizes = [8, 32], strides = [1, 1]} : vector<8x128xf32> to vector<8x32xf32>
    %74 = vector.extract_strided_slice %72 {offsets = [0, 32], sizes = [8, 32], strides = [1, 1]} : vector<8x128xf32> to vector<8x32xf32>
    %75 = vector.extract_strided_slice %72 {offsets = [0, 64], sizes = [8, 32], strides = [1, 1]} : vector<8x128xf32> to vector<8x32xf32>
    %76 = vector.extract_strided_slice %67 {offsets = [0, 96], sizes = [8, 32], strides = [1, 1]} : vector<8x128xf32> to vector<8x32xf32>
    %77 = math.tanh %76 : vector<8x32xf32>
    %78 = arith.mulf %74, %62 : vector<8x32xf32>
    %79 = arith.mulf %73, %77 : vector<8x32xf32>
    %80 = arith.addf %78, %79 : vector<8x32xf32>
    %81 = math.tanh %80 : vector<8x32xf32>
    %82 = arith.mulf %75, %81 : vector<8x32xf32>
    %83 = vector.extract_strided_slice %7 {offsets = [32, 0], sizes = [8, 128], strides = [1, 1]} : vector<64x128xf32> to vector<8x128xf32>
    %cst_18 = arith.constant dense<0.000000e+00> : vector<8x128xf32>
    %84 = tpu.matmul %82, %8, %cst_18 {dimension_numbers = #tpu.dot_dimension_numbers<[1], [0], [0], [1], [0, 0, 1, 1], [], []>} : vector<8x32xf32>, vector<32x128xf32>, vector<8x128xf32> -> vector<8x128xf32>
    %85 = arith.addf %83, %84 : vector<8x128xf32>
    %86 = arith.negf %85 : vector<8x128xf32>
    %87 = math.exp %86 : vector<8x128xf32>
    %cst_19 = arith.constant 1.000000e+00 : f32
    %88 = vector.broadcast %cst_19 : f32 to vector<8x128xf32>
    %89 = arith.addf %88, %87 : vector<8x128xf32>
    %90 = arith.divf %88, %89 : vector<8x128xf32>
    %91 = vector.extract_strided_slice %90 {offsets = [0, 0], sizes = [8, 32], strides = [1, 1]} : vector<8x128xf32> to vector<8x32xf32>
    %92 = vector.extract_strided_slice %90 {offsets = [0, 32], sizes = [8, 32], strides = [1, 1]} : vector<8x128xf32> to vector<8x32xf32>
    %93 = vector.extract_strided_slice %90 {offsets = [0, 64], sizes = [8, 32], strides = [1, 1]} : vector<8x128xf32> to vector<8x32xf32>
    %94 = vector.extract_strided_slice %85 {offsets = [0, 96], sizes = [8, 32], strides = [1, 1]} : vector<8x128xf32> to vector<8x32xf32>
    %95 = math.tanh %94 : vector<8x32xf32>
    %96 = arith.mulf %92, %80 : vector<8x32xf32>
    %97 = arith.mulf %91, %95 : vector<8x32xf32>
    %98 = arith.addf %96, %97 : vector<8x32xf32>
    %99 = math.tanh %98 : vector<8x32xf32>
    %100 = arith.mulf %93, %99 : vector<8x32xf32>
    %101 = vector.extract_strided_slice %7 {offsets = [40, 0], sizes = [8, 128], strides = [1, 1]} : vector<64x128xf32> to vector<8x128xf32>
    %cst_20 = arith.constant dense<0.000000e+00> : vector<8x128xf32>
    %102 = tpu.matmul %100, %8, %cst_20 {dimension_numbers = #tpu.dot_dimension_numbers<[1], [0], [0], [1], [0, 0, 1, 1], [], []>} : vector<8x32xf32>, vector<32x128xf32>, vector<8x128xf32> -> vector<8x128xf32>
    %103 = arith.addf %101, %102 : vector<8x128xf32>
    %104 = arith.negf %103 : vector<8x128xf32>
    %105 = math.exp %104 : vector<8x128xf32>
    %cst_21 = arith.constant 1.000000e+00 : f32
    %106 = vector.broadcast %cst_21 : f32 to vector<8x128xf32>
    %107 = arith.addf %106, %105 : vector<8x128xf32>
    %108 = arith.divf %106, %107 : vector<8x128xf32>
    %109 = vector.extract_strided_slice %108 {offsets = [0, 0], sizes = [8, 32], strides = [1, 1]} : vector<8x128xf32> to vector<8x32xf32>
    %110 = vector.extract_strided_slice %108 {offsets = [0, 32], sizes = [8, 32], strides = [1, 1]} : vector<8x128xf32> to vector<8x32xf32>
    %111 = vector.extract_strided_slice %108 {offsets = [0, 64], sizes = [8, 32], strides = [1, 1]} : vector<8x128xf32> to vector<8x32xf32>
    %112 = vector.extract_strided_slice %103 {offsets = [0, 96], sizes = [8, 32], strides = [1, 1]} : vector<8x128xf32> to vector<8x32xf32>
    %113 = math.tanh %112 : vector<8x32xf32>
    %114 = arith.mulf %110, %98 : vector<8x32xf32>
    %115 = arith.mulf %109, %113 : vector<8x32xf32>
    %116 = arith.addf %114, %115 : vector<8x32xf32>
    %117 = math.tanh %116 : vector<8x32xf32>
    %118 = arith.mulf %111, %117 : vector<8x32xf32>
    %119 = vector.extract_strided_slice %7 {offsets = [48, 0], sizes = [8, 128], strides = [1, 1]} : vector<64x128xf32> to vector<8x128xf32>
    %cst_22 = arith.constant dense<0.000000e+00> : vector<8x128xf32>
    %120 = tpu.matmul %118, %8, %cst_22 {dimension_numbers = #tpu.dot_dimension_numbers<[1], [0], [0], [1], [0, 0, 1, 1], [], []>} : vector<8x32xf32>, vector<32x128xf32>, vector<8x128xf32> -> vector<8x128xf32>
    %121 = arith.addf %119, %120 : vector<8x128xf32>
    %122 = arith.negf %121 : vector<8x128xf32>
    %123 = math.exp %122 : vector<8x128xf32>
    %cst_23 = arith.constant 1.000000e+00 : f32
    %124 = vector.broadcast %cst_23 : f32 to vector<8x128xf32>
    %125 = arith.addf %124, %123 : vector<8x128xf32>
    %126 = arith.divf %124, %125 : vector<8x128xf32>
    %127 = vector.extract_strided_slice %126 {offsets = [0, 0], sizes = [8, 32], strides = [1, 1]} : vector<8x128xf32> to vector<8x32xf32>
    %128 = vector.extract_strided_slice %126 {offsets = [0, 32], sizes = [8, 32], strides = [1, 1]} : vector<8x128xf32> to vector<8x32xf32>
    %129 = vector.extract_strided_slice %126 {offsets = [0, 64], sizes = [8, 32], strides = [1, 1]} : vector<8x128xf32> to vector<8x32xf32>
    %130 = vector.extract_strided_slice %121 {offsets = [0, 96], sizes = [8, 32], strides = [1, 1]} : vector<8x128xf32> to vector<8x32xf32>
    %131 = math.tanh %130 : vector<8x32xf32>
    %132 = arith.mulf %128, %116 : vector<8x32xf32>
    %133 = arith.mulf %127, %131 : vector<8x32xf32>
    %134 = arith.addf %132, %133 : vector<8x32xf32>
    %135 = math.tanh %134 : vector<8x32xf32>
    %136 = arith.mulf %129, %135 : vector<8x32xf32>
    %137 = vector.extract_strided_slice %7 {offsets = [56, 0], sizes = [8, 128], strides = [1, 1]} : vector<64x128xf32> to vector<8x128xf32>
    %cst_24 = arith.constant dense<0.000000e+00> : vector<8x128xf32>
    %138 = tpu.matmul %136, %8, %cst_24 {dimension_numbers = #tpu.dot_dimension_numbers<[1], [0], [0], [1], [0, 0, 1, 1], [], []>} : vector<8x32xf32>, vector<32x128xf32>, vector<8x128xf32> -> vector<8x128xf32>
    %139 = arith.addf %137, %138 : vector<8x128xf32>
    %140 = arith.negf %139 : vector<8x128xf32>
    %141 = math.exp %140 : vector<8x128xf32>
    %cst_25 = arith.constant 1.000000e+00 : f32
    %142 = vector.broadcast %cst_25 : f32 to vector<8x128xf32>
    %143 = arith.addf %142, %141 : vector<8x128xf32>
    %144 = arith.divf %142, %143 : vector<8x128xf32>
    %145 = vector.extract_strided_slice %144 {offsets = [0, 0], sizes = [8, 32], strides = [1, 1]} : vector<8x128xf32> to vector<8x32xf32>
    %146 = vector.extract_strided_slice %144 {offsets = [0, 32], sizes = [8, 32], strides = [1, 1]} : vector<8x128xf32> to vector<8x32xf32>
    %147 = vector.extract_strided_slice %144 {offsets = [0, 64], sizes = [8, 32], strides = [1, 1]} : vector<8x128xf32> to vector<8x32xf32>
    %148 = vector.extract_strided_slice %139 {offsets = [0, 96], sizes = [8, 32], strides = [1, 1]} : vector<8x128xf32> to vector<8x32xf32>
    %149 = math.tanh %148 : vector<8x32xf32>
    %150 = arith.mulf %146, %134 : vector<8x32xf32>
    %151 = arith.mulf %145, %149 : vector<8x32xf32>
    %152 = arith.addf %150, %151 : vector<8x32xf32>
    %153 = math.tanh %152 : vector<8x32xf32>
    %154 = arith.mulf %147, %153 : vector<8x32xf32>
    %155 = tpu.concatenate %28, %46, %64, %82, %100, %118, %136, %154 in 0 : vector<8x32xf32>, vector<8x32xf32>, vector<8x32xf32>, vector<8x32xf32>, vector<8x32xf32>, vector<8x32xf32>, vector<8x32xf32>, vector<8x32xf32> -> vector<64x32xf32>
    %156 = math.tanh %154 : vector<8x32xf32>
    %157 = math.tanh %152 : vector<8x32xf32>
    %c0_26 = arith.constant 0 : index
    %c0_27 = arith.constant 0 : index
    %158 = vector.load %arg5[%c0_26, %c0_27] : memref<32x128xf32, #tpu.memory_space<vmem>>, vector<32x128xf32>
    %cst_28 = arith.constant dense<0.000000e+00> : vector<64x128xf32>
    %159 = tpu.matmul %155, %158, %cst_28 {dimension_numbers = #tpu.dot_dimension_numbers<[1], [0], [0], [1], [0, 0, 1, 1], [], []>} : vector<64x32xf32>, vector<32x128xf32>, vector<64x128xf32> -> vector<64x128xf32>
    %c0_29 = arith.constant 0 : index
    %c0_30 = arith.constant 0 : index
    %160 = vector.load %arg7[%c0_29, %c0_30] : memref<1x128xf32, #tpu.memory_space<vmem>>, vector<1x128xf32>
    %161 = vector.broadcast %160 : vector<1x128xf32> to vector<64x128xf32>
    %162 = arith.addf %159, %161 : vector<64x128xf32>
    %c0_31 = arith.constant 0 : index
    %c0_32 = arith.constant 0 : index
    %163 = vector.load %arg6[%c0_31, %c0_32] : memref<32x128xf32, #tpu.memory_space<vmem>>, vector<32x128xf32>
    %cst_33 = arith.constant 0.000000e+00 : f32
    %164 = vector.broadcast %cst_33 : f32 to vector<8x32xf32>
    %cst_34 = arith.constant 0.000000e+00 : f32
    %165 = vector.broadcast %cst_34 : f32 to vector<8x32xf32>
    %166 = vector.extract_strided_slice %162 {offsets = [0, 0], sizes = [8, 128], strides = [1, 1]} : vector<64x128xf32> to vector<8x128xf32>
    %cst_35 = arith.constant dense<0.000000e+00> : vector<8x128xf32>
    %167 = tpu.matmul %164, %163, %cst_35 {dimension_numbers = #tpu.dot_dimension_numbers<[1], [0], [0], [1], [0, 0, 1, 1], [], []>} : vector<8x32xf32>, vector<32x128xf32>, vector<8x128xf32> -> vector<8x128xf32>
    %168 = arith.addf %166, %167 : vector<8x128xf32>
    %169 = arith.negf %168 : vector<8x128xf32>
    %170 = math.exp %169 : vector<8x128xf32>
    %cst_36 = arith.constant 1.000000e+00 : f32
    %171 = vector.broadcast %cst_36 : f32 to vector<8x128xf32>
    %172 = arith.addf %171, %170 : vector<8x128xf32>
    %173 = arith.divf %171, %172 : vector<8x128xf32>
    %174 = vector.extract_strided_slice %173 {offsets = [0, 0], sizes = [8, 32], strides = [1, 1]} : vector<8x128xf32> to vector<8x32xf32>
    %175 = vector.extract_strided_slice %173 {offsets = [0, 32], sizes = [8, 32], strides = [1, 1]} : vector<8x128xf32> to vector<8x32xf32>
    %176 = vector.extract_strided_slice %173 {offsets = [0, 64], sizes = [8, 32], strides = [1, 1]} : vector<8x128xf32> to vector<8x32xf32>
    %177 = vector.extract_strided_slice %168 {offsets = [0, 96], sizes = [8, 32], strides = [1, 1]} : vector<8x128xf32> to vector<8x32xf32>
    %178 = math.tanh %177 : vector<8x32xf32>
    %179 = arith.mulf %175, %165 : vector<8x32xf32>
    %180 = arith.mulf %174, %178 : vector<8x32xf32>
    %181 = arith.addf %179, %180 : vector<8x32xf32>
    %182 = math.tanh %181 : vector<8x32xf32>
    %183 = arith.mulf %176, %182 : vector<8x32xf32>
    %184 = vector.extract_strided_slice %162 {offsets = [8, 0], sizes = [8, 128], strides = [1, 1]} : vector<64x128xf32> to vector<8x128xf32>
    %cst_37 = arith.constant dense<0.000000e+00> : vector<8x128xf32>
    %185 = tpu.matmul %183, %163, %cst_37 {dimension_numbers = #tpu.dot_dimension_numbers<[1], [0], [0], [1], [0, 0, 1, 1], [], []>} : vector<8x32xf32>, vector<32x128xf32>, vector<8x128xf32> -> vector<8x128xf32>
    %186 = arith.addf %184, %185 : vector<8x128xf32>
    %187 = arith.negf %186 : vector<8x128xf32>
    %188 = math.exp %187 : vector<8x128xf32>
    %cst_38 = arith.constant 1.000000e+00 : f32
    %189 = vector.broadcast %cst_38 : f32 to vector<8x128xf32>
    %190 = arith.addf %189, %188 : vector<8x128xf32>
    %191 = arith.divf %189, %190 : vector<8x128xf32>
    %192 = vector.extract_strided_slice %191 {offsets = [0, 0], sizes = [8, 32], strides = [1, 1]} : vector<8x128xf32> to vector<8x32xf32>
    %193 = vector.extract_strided_slice %191 {offsets = [0, 32], sizes = [8, 32], strides = [1, 1]} : vector<8x128xf32> to vector<8x32xf32>
    %194 = vector.extract_strided_slice %191 {offsets = [0, 64], sizes = [8, 32], strides = [1, 1]} : vector<8x128xf32> to vector<8x32xf32>
    %195 = vector.extract_strided_slice %186 {offsets = [0, 96], sizes = [8, 32], strides = [1, 1]} : vector<8x128xf32> to vector<8x32xf32>
    %196 = math.tanh %195 : vector<8x32xf32>
    %197 = arith.mulf %193, %181 : vector<8x32xf32>
    %198 = arith.mulf %192, %196 : vector<8x32xf32>
    %199 = arith.addf %197, %198 : vector<8x32xf32>
    %200 = math.tanh %199 : vector<8x32xf32>
    %201 = arith.mulf %194, %200 : vector<8x32xf32>
    %202 = vector.extract_strided_slice %162 {offsets = [16, 0], sizes = [8, 128], strides = [1, 1]} : vector<64x128xf32> to vector<8x128xf32>
    %cst_39 = arith.constant dense<0.000000e+00> : vector<8x128xf32>
    %203 = tpu.matmul %201, %163, %cst_39 {dimension_numbers = #tpu.dot_dimension_numbers<[1], [0], [0], [1], [0, 0, 1, 1], [], []>} : vector<8x32xf32>, vector<32x128xf32>, vector<8x128xf32> -> vector<8x128xf32>
    %204 = arith.addf %202, %203 : vector<8x128xf32>
    %205 = arith.negf %204 : vector<8x128xf32>
    %206 = math.exp %205 : vector<8x128xf32>
    %cst_40 = arith.constant 1.000000e+00 : f32
    %207 = vector.broadcast %cst_40 : f32 to vector<8x128xf32>
    %208 = arith.addf %207, %206 : vector<8x128xf32>
    %209 = arith.divf %207, %208 : vector<8x128xf32>
    %210 = vector.extract_strided_slice %209 {offsets = [0, 0], sizes = [8, 32], strides = [1, 1]} : vector<8x128xf32> to vector<8x32xf32>
    %211 = vector.extract_strided_slice %209 {offsets = [0, 32], sizes = [8, 32], strides = [1, 1]} : vector<8x128xf32> to vector<8x32xf32>
    %212 = vector.extract_strided_slice %209 {offsets = [0, 64], sizes = [8, 32], strides = [1, 1]} : vector<8x128xf32> to vector<8x32xf32>
    %213 = vector.extract_strided_slice %204 {offsets = [0, 96], sizes = [8, 32], strides = [1, 1]} : vector<8x128xf32> to vector<8x32xf32>
    %214 = math.tanh %213 : vector<8x32xf32>
    %215 = arith.mulf %211, %199 : vector<8x32xf32>
    %216 = arith.mulf %210, %214 : vector<8x32xf32>
    %217 = arith.addf %215, %216 : vector<8x32xf32>
    %218 = math.tanh %217 : vector<8x32xf32>
    %219 = arith.mulf %212, %218 : vector<8x32xf32>
    %220 = vector.extract_strided_slice %162 {offsets = [24, 0], sizes = [8, 128], strides = [1, 1]} : vector<64x128xf32> to vector<8x128xf32>
    %cst_41 = arith.constant dense<0.000000e+00> : vector<8x128xf32>
    %221 = tpu.matmul %219, %163, %cst_41 {dimension_numbers = #tpu.dot_dimension_numbers<[1], [0], [0], [1], [0, 0, 1, 1], [], []>} : vector<8x32xf32>, vector<32x128xf32>, vector<8x128xf32> -> vector<8x128xf32>
    %222 = arith.addf %220, %221 : vector<8x128xf32>
    %223 = arith.negf %222 : vector<8x128xf32>
    %224 = math.exp %223 : vector<8x128xf32>
    %cst_42 = arith.constant 1.000000e+00 : f32
    %225 = vector.broadcast %cst_42 : f32 to vector<8x128xf32>
    %226 = arith.addf %225, %224 : vector<8x128xf32>
    %227 = arith.divf %225, %226 : vector<8x128xf32>
    %228 = vector.extract_strided_slice %227 {offsets = [0, 0], sizes = [8, 32], strides = [1, 1]} : vector<8x128xf32> to vector<8x32xf32>
    %229 = vector.extract_strided_slice %227 {offsets = [0, 32], sizes = [8, 32], strides = [1, 1]} : vector<8x128xf32> to vector<8x32xf32>
    %230 = vector.extract_strided_slice %227 {offsets = [0, 64], sizes = [8, 32], strides = [1, 1]} : vector<8x128xf32> to vector<8x32xf32>
    %231 = vector.extract_strided_slice %222 {offsets = [0, 96], sizes = [8, 32], strides = [1, 1]} : vector<8x128xf32> to vector<8x32xf32>
    %232 = math.tanh %231 : vector<8x32xf32>
    %233 = arith.mulf %229, %217 : vector<8x32xf32>
    %234 = arith.mulf %228, %232 : vector<8x32xf32>
    %235 = arith.addf %233, %234 : vector<8x32xf32>
    %236 = math.tanh %235 : vector<8x32xf32>
    %237 = arith.mulf %230, %236 : vector<8x32xf32>
    %238 = vector.extract_strided_slice %162 {offsets = [32, 0], sizes = [8, 128], strides = [1, 1]} : vector<64x128xf32> to vector<8x128xf32>
    %cst_43 = arith.constant dense<0.000000e+00> : vector<8x128xf32>
    %239 = tpu.matmul %237, %163, %cst_43 {dimension_numbers = #tpu.dot_dimension_numbers<[1], [0], [0], [1], [0, 0, 1, 1], [], []>} : vector<8x32xf32>, vector<32x128xf32>, vector<8x128xf32> -> vector<8x128xf32>
    %240 = arith.addf %238, %239 : vector<8x128xf32>
    %241 = arith.negf %240 : vector<8x128xf32>
    %242 = math.exp %241 : vector<8x128xf32>
    %cst_44 = arith.constant 1.000000e+00 : f32
    %243 = vector.broadcast %cst_44 : f32 to vector<8x128xf32>
    %244 = arith.addf %243, %242 : vector<8x128xf32>
    %245 = arith.divf %243, %244 : vector<8x128xf32>
    %246 = vector.extract_strided_slice %245 {offsets = [0, 0], sizes = [8, 32], strides = [1, 1]} : vector<8x128xf32> to vector<8x32xf32>
    %247 = vector.extract_strided_slice %245 {offsets = [0, 32], sizes = [8, 32], strides = [1, 1]} : vector<8x128xf32> to vector<8x32xf32>
    %248 = vector.extract_strided_slice %245 {offsets = [0, 64], sizes = [8, 32], strides = [1, 1]} : vector<8x128xf32> to vector<8x32xf32>
    %249 = vector.extract_strided_slice %240 {offsets = [0, 96], sizes = [8, 32], strides = [1, 1]} : vector<8x128xf32> to vector<8x32xf32>
    %250 = math.tanh %249 : vector<8x32xf32>
    %251 = arith.mulf %247, %235 : vector<8x32xf32>
    %252 = arith.mulf %246, %250 : vector<8x32xf32>
    %253 = arith.addf %251, %252 : vector<8x32xf32>
    %254 = math.tanh %253 : vector<8x32xf32>
    %255 = arith.mulf %248, %254 : vector<8x32xf32>
    %256 = vector.extract_strided_slice %162 {offsets = [40, 0], sizes = [8, 128], strides = [1, 1]} : vector<64x128xf32> to vector<8x128xf32>
    %cst_45 = arith.constant dense<0.000000e+00> : vector<8x128xf32>
    %257 = tpu.matmul %255, %163, %cst_45 {dimension_numbers = #tpu.dot_dimension_numbers<[1], [0], [0], [1], [0, 0, 1, 1], [], []>} : vector<8x32xf32>, vector<32x128xf32>, vector<8x128xf32> -> vector<8x128xf32>
    %258 = arith.addf %256, %257 : vector<8x128xf32>
    %259 = arith.negf %258 : vector<8x128xf32>
    %260 = math.exp %259 : vector<8x128xf32>
    %cst_46 = arith.constant 1.000000e+00 : f32
    %261 = vector.broadcast %cst_46 : f32 to vector<8x128xf32>
    %262 = arith.addf %261, %260 : vector<8x128xf32>
    %263 = arith.divf %261, %262 : vector<8x128xf32>
    %264 = vector.extract_strided_slice %263 {offsets = [0, 0], sizes = [8, 32], strides = [1, 1]} : vector<8x128xf32> to vector<8x32xf32>
    %265 = vector.extract_strided_slice %263 {offsets = [0, 32], sizes = [8, 32], strides = [1, 1]} : vector<8x128xf32> to vector<8x32xf32>
    %266 = vector.extract_strided_slice %263 {offsets = [0, 64], sizes = [8, 32], strides = [1, 1]} : vector<8x128xf32> to vector<8x32xf32>
    %267 = vector.extract_strided_slice %258 {offsets = [0, 96], sizes = [8, 32], strides = [1, 1]} : vector<8x128xf32> to vector<8x32xf32>
    %268 = math.tanh %267 : vector<8x32xf32>
    %269 = arith.mulf %265, %253 : vector<8x32xf32>
    %270 = arith.mulf %264, %268 : vector<8x32xf32>
    %271 = arith.addf %269, %270 : vector<8x32xf32>
    %272 = math.tanh %271 : vector<8x32xf32>
    %273 = arith.mulf %266, %272 : vector<8x32xf32>
    %274 = vector.extract_strided_slice %162 {offsets = [48, 0], sizes = [8, 128], strides = [1, 1]} : vector<64x128xf32> to vector<8x128xf32>
    %cst_47 = arith.constant dense<0.000000e+00> : vector<8x128xf32>
    %275 = tpu.matmul %273, %163, %cst_47 {dimension_numbers = #tpu.dot_dimension_numbers<[1], [0], [0], [1], [0, 0, 1, 1], [], []>} : vector<8x32xf32>, vector<32x128xf32>, vector<8x128xf32> -> vector<8x128xf32>
    %276 = arith.addf %274, %275 : vector<8x128xf32>
    %277 = arith.negf %276 : vector<8x128xf32>
    %278 = math.exp %277 : vector<8x128xf32>
    %cst_48 = arith.constant 1.000000e+00 : f32
    %279 = vector.broadcast %cst_48 : f32 to vector<8x128xf32>
    %280 = arith.addf %279, %278 : vector<8x128xf32>
    %281 = arith.divf %279, %280 : vector<8x128xf32>
    %282 = vector.extract_strided_slice %281 {offsets = [0, 0], sizes = [8, 32], strides = [1, 1]} : vector<8x128xf32> to vector<8x32xf32>
    %283 = vector.extract_strided_slice %281 {offsets = [0, 32], sizes = [8, 32], strides = [1, 1]} : vector<8x128xf32> to vector<8x32xf32>
    %284 = vector.extract_strided_slice %281 {offsets = [0, 64], sizes = [8, 32], strides = [1, 1]} : vector<8x128xf32> to vector<8x32xf32>
    %285 = vector.extract_strided_slice %276 {offsets = [0, 96], sizes = [8, 32], strides = [1, 1]} : vector<8x128xf32> to vector<8x32xf32>
    %286 = math.tanh %285 : vector<8x32xf32>
    %287 = arith.mulf %283, %271 : vector<8x32xf32>
    %288 = arith.mulf %282, %286 : vector<8x32xf32>
    %289 = arith.addf %287, %288 : vector<8x32xf32>
    %290 = math.tanh %289 : vector<8x32xf32>
    %291 = arith.mulf %284, %290 : vector<8x32xf32>
    %292 = vector.extract_strided_slice %162 {offsets = [56, 0], sizes = [8, 128], strides = [1, 1]} : vector<64x128xf32> to vector<8x128xf32>
    %cst_49 = arith.constant dense<0.000000e+00> : vector<8x128xf32>
    %293 = tpu.matmul %291, %163, %cst_49 {dimension_numbers = #tpu.dot_dimension_numbers<[1], [0], [0], [1], [0, 0, 1, 1], [], []>} : vector<8x32xf32>, vector<32x128xf32>, vector<8x128xf32> -> vector<8x128xf32>
    %294 = arith.addf %292, %293 : vector<8x128xf32>
    %295 = arith.negf %294 : vector<8x128xf32>
    %296 = math.exp %295 : vector<8x128xf32>
    %cst_50 = arith.constant 1.000000e+00 : f32
    %297 = vector.broadcast %cst_50 : f32 to vector<8x128xf32>
    %298 = arith.addf %297, %296 : vector<8x128xf32>
    %299 = arith.divf %297, %298 : vector<8x128xf32>
    %300 = vector.extract_strided_slice %299 {offsets = [0, 0], sizes = [8, 32], strides = [1, 1]} : vector<8x128xf32> to vector<8x32xf32>
    %301 = vector.extract_strided_slice %299 {offsets = [0, 32], sizes = [8, 32], strides = [1, 1]} : vector<8x128xf32> to vector<8x32xf32>
    %302 = vector.extract_strided_slice %299 {offsets = [0, 64], sizes = [8, 32], strides = [1, 1]} : vector<8x128xf32> to vector<8x32xf32>
    %303 = vector.extract_strided_slice %294 {offsets = [0, 96], sizes = [8, 32], strides = [1, 1]} : vector<8x128xf32> to vector<8x32xf32>
    %304 = math.tanh %303 : vector<8x32xf32>
    %305 = arith.mulf %301, %289 : vector<8x32xf32>
    %306 = arith.mulf %300, %304 : vector<8x32xf32>
    %307 = arith.addf %305, %306 : vector<8x32xf32>
    %308 = math.tanh %307 : vector<8x32xf32>
    %309 = arith.mulf %302, %308 : vector<8x32xf32>
    %310 = math.tanh %309 : vector<8x32xf32>
    %311 = math.tanh %307 : vector<8x32xf32>
    %312 = tpu.concatenate %156, %157, %310, %311 in 1 : vector<8x32xf32>, vector<8x32xf32>, vector<8x32xf32>, vector<8x32xf32> -> vector<8x128xf32>
    %c0_51 = arith.constant 0 : index
    %c0_52 = arith.constant 0 : index
    %313 = vector.load %arg8[%c0_51, %c0_52] : memref<128x32xf32, #tpu.memory_space<vmem>>, vector<128x32xf32>
    %cst_53 = arith.constant dense<0.000000e+00> : vector<8x32xf32>
    %314 = tpu.matmul %312, %313, %cst_53 {dimension_numbers = #tpu.dot_dimension_numbers<[1], [0], [0], [1], [0, 0, 1, 1], [], []>} : vector<8x128xf32>, vector<128x32xf32>, vector<8x32xf32> -> vector<8x32xf32>
    %c0_54 = arith.constant 0 : index
    %c0_55 = arith.constant 0 : index
    %315 = vector.load %arg9[%c0_54, %c0_55] : memref<1x32xf32, #tpu.memory_space<vmem>>, vector<1x32xf32>
    %316 = vector.broadcast %315 : vector<1x32xf32> to vector<8x32xf32>
    %317 = arith.addf %314, %316 : vector<8x32xf32>
    %c0_56 = arith.constant 0 : index
    %c0_57 = arith.constant 0 : index
    %318 = vector.load %arg10[%c0_56, %c0_57] : memref<8x32xf32, #tpu.memory_space<vmem>>, vector<8x32xf32>
    tpu.vector_store %arg10[%c0_56, %c0_57], %317 {strides = array<i32>} : memref<8x32xf32, #tpu.memory_space<vmem>>, vector<8x32xf32>,
    return
  }
  func.func @transform_0(%arg0: i32) -> (i32, i32, i32) {
    %c0_i32 = arith.constant 0 : i32
    %c0_i32_0 = arith.constant 0 : i32
    %c0_i32_1 = arith.constant 0 : i32
    return %c0_i32, %arg0, %c0_i32_0 : i32, i32, i32
  }
  func.func @transform_1(%arg0: i32) -> (i32, i32) {
    %c0_i32 = arith.constant 0 : i32
    %c0_i32_0 = arith.constant 0 : i32
    %c0_i32_1 = arith.constant 0 : i32
    return %c0_i32, %c0_i32_0 : i32, i32
  }
  func.func @transform_2(%arg0: i32) -> (i32, i32) {
    %c0_i32 = arith.constant 0 : i32
    %c0_i32_0 = arith.constant 0 : i32
    %c0_i32_1 = arith.constant 0 : i32
    return %c0_i32, %c0_i32_0 : i32, i32
  }
  func.func @transform_3(%arg0: i32) -> (i32, i32) {
    %c0_i32 = arith.constant 0 : i32
    %c0_i32_0 = arith.constant 0 : i32
    %c0_i32_1 = arith.constant 0 : i32
    return %c0_i32, %c0_i32_0 : i32, i32
  }
  func.func @transform_4(%arg0: i32) -> (i32, i32) {
    %c0_i32 = arith.constant 0 : i32
    %c0_i32_0 = arith.constant 0 : i32
    %c0_i32_1 = arith.constant 0 : i32
    return %c0_i32, %c0_i32_0 : i32, i32
  }
  func.func @transform_5(%arg0: i32) -> (i32, i32) {
    %c0_i32 = arith.constant 0 : i32
    %c0_i32_0 = arith.constant 0 : i32
    %c0_i32_1 = arith.constant 0 : i32
    return %c0_i32, %c0_i32_0 : i32, i32
  }
  func.func @transform_6(%arg0: i32) -> (i32, i32) {
    %c0_i32 = arith.constant 0 : i32
    %c0_i32_0 = arith.constant 0 : i32
    %c0_i32_1 = arith.constant 0 : i32
    return %c0_i32, %c0_i32_0 : i32, i32
  }
  func.func @transform_7(%arg0: i32) -> (i32, i32) {
    %c0_i32 = arith.constant 0 : i32
    %c0_i32_0 = arith.constant 0 : i32
    %c0_i32_1 = arith.constant 0 : i32
    return %c0_i32, %c0_i32_0 : i32, i32
  }
  func.func @transform_8(%arg0: i32) -> (i32, i32) {
    %c0_i32 = arith.constant 0 : i32
    %c0_i32_0 = arith.constant 0 : i32
    %c0_i32_1 = arith.constant 0 : i32
    return %c0_i32, %c0_i32_0 : i32, i32
  }
  func.func @transform_9(%arg0: i32) -> (i32, i32) {
    %c0_i32 = arith.constant 0 : i32
    %c0_i32_0 = arith.constant 0 : i32
    return %arg0, %c0_i32 : i32, i32
  }
}

</mosaic_0001>

<llo_original>
// kernel: tpu_custom_call.1
$region0: #{tpu_custom_call.1}
  #allocation0 [shape = 'u32[]', space=smem, size = 0x4, offset = 0x4, fixed_abs, tag = 'smem constant byte address 0x4 - core index']
  #allocation1 [shape = 'u32[144,128]{1,0:T(1,128)}', space=vmem, size = 0x12000, scoped, tag = 'internal scratch']
  %s0 = inlined_call_operand.vmem [shape: f32[8,8,32], index: 0, kind: input, shape index: {}]
  %s1 = inlined_call_operand.vmem [shape: f32[32,128], index: 1, kind: input, shape index: {}]
  %s2 = inlined_call_operand.vmem [shape: f32[32,128], index: 2, kind: input, shape index: {}]
  %s3 = inlined_call_operand.vmem [shape: f32[1,128], index: 3, kind: input, shape index: {}]
  %s4 = inlined_call_operand.vmem [shape: f32[32,128], index: 4, kind: input, shape index: {}]
  %s5 = inlined_call_operand.hbm [shape: f32[32,128], index: 5, kind: input, shape index: {}]
  %s6 = inlined_call_operand.vmem [shape: f32[1,128], index: 6, kind: input, shape index: {}]
  %s7 = inlined_call_operand.vmem [shape: f32[128,32], index: 7, kind: input, shape index: {}]
  %s8 = inlined_call_operand.vmem [shape: f32[1,32], index: 8, kind: input, shape index: {}]
  %s9 = inlined_call_operand.hbm [shape: f32[8,32], index: 9, kind: output, shape index: {}]
  %s10 = sld [smem:[#allocation0]]
  $region50: #{tpu_custom_call.1} parent=0
    _
  %s12 = ssub.s32 1, %s10
  %s13 = scalar_select 0, %s12, %s10
  $region1: #{tpu_custom_call.1} parent=0
    #allocation2 [shape = 'u8[16384]{0}', space=vmem, size = 0x4000, scoped, tag = 'input window, operand 5, single buffered']
    #allocation3 [shape = 's32[1]{0}', space=sflag, size = 0x4, scoped, tag = 'scoped memory for tpu_custom_call.1']
    #allocation4 [shape = 's32[1]{0}', space=sflag, size = 0x4, scoped, tag = 'scoped memory for tpu_custom_call.1']
    #allocation5 [shape = 'u8[4096]{0}', space=vmem, size = 0x1000, scoped, tag = 'output window, operand 0, single buffered']
    %14 = vsyncpa [#allocation3], 0
    %15 = vsyncpa [#allocation4], 0
    // Predicated region
    $region2: #{tpu_custom_call.1} parent=1 // pred_check
      _
    $region3: #{tpu_custom_call.1} parent=1 // pred_check_branch
      %17 = sbr.rel (0) target = $region5
    $region4: #{tpu_custom_call.1} parent=1 // pred_region
      _
    $region5: #{tpu_custom_call.1} parent=1 // pred_fallthru
      _
    // Predicated region
    $region6: #{tpu_custom_call.1} parent=1 // pred_check
      _
    $region7: #{tpu_custom_call.1} parent=1 // pred_check_branch
      %19 = sbr.rel (0) target = $region9
    $region8: #{tpu_custom_call.1} parent=1 // pred_region
      _
    $region9: #{tpu_custom_call.1} parent=1 // pred_fallthru
      _
    // Predicated region
    $region10: #{tpu_custom_call.1} parent=1 // pred_check
      _
    $region11: #{tpu_custom_call.1} parent=1 // pred_check_branch
      %21 = sbr.rel (0) target = $region13
    $region12: #{tpu_custom_call.1} parent=1 // pred_region
      _
    $region13: #{tpu_custom_call.1} parent=1 // pred_fallthru
      _
    // Predicated region
    $region14: #{tpu_custom_call.1} parent=1 // pred_check
      _
    $region15: #{tpu_custom_call.1} parent=1 // pred_check_branch
      %23 = sbr.rel (0) target = $region17
    $region16: #{tpu_custom_call.1} parent=1 // pred_region
      _
    $region17: #{tpu_custom_call.1} parent=1 // pred_fallthru
      _
    // Predicated region
    $region18: #{tpu_custom_call.1} parent=1 // pred_check
      _
    $region19: #{tpu_custom_call.1} parent=1 // pred_check_branch
      %25 = sbr.rel (0) target = $region21
    $region20: #{tpu_custom_call.1} parent=1 // pred_region
      _
    $region21: #{tpu_custom_call.1} parent=1 // pred_fallthru
      _
    // Predicated region
    $region22: #{tpu_custom_call.1} parent=1 // pred_check
      _
    $region23: #{tpu_custom_call.1} parent=1 // pred_check_branch
      %27 = sbr.rel (0) target = $region25
    $region24: #{tpu_custom_call.1} parent=1 // pred_region
      %s29 = ssub.s32 512, 512
      %30 = vsyncadd [#allocation3], %s29
      %s31 = sshll.u32 [#allocation2], 4
      %s32 = int_to_ptr.vmem [resolvable:$true] %s31
      %37 = dma.hbm_to_vmem [thread:$0]  %s5, 512, %s32, [#allocation3], 128, 128, 8
    $region25: #{tpu_custom_call.1} parent=1 // pred_fallthru
      _
    // Predicated region
    $region26: #{tpu_custom_call.1} parent=1 // pred_check
      _
    $region27: #{tpu_custom_call.1} parent=1 // pred_check_branch
      %39 = sbr.rel (0) target = $region29
    $region28: #{tpu_custom_call.1} parent=1 // pred_region
      _
    $region29: #{tpu_custom_call.1} parent=1 // pred_fallthru
      _
    // Predicated region
    $region30: #{tpu_custom_call.1} parent=1 // pred_check
      _
    $region31: #{tpu_custom_call.1} parent=1 // pred_check_branch
      %41 = sbr.rel (0) target = $region33
    $region32: #{tpu_custom_call.1} parent=1 // pred_region
      _
    $region33: #{tpu_custom_call.1} parent=1 // pred_fallthru
      _
    // Predicated region
    $region34: #{tpu_custom_call.1} parent=1 // pred_check
      _
    $region35: #{tpu_custom_call.1} parent=1 // pred_check_branch
      %43 = sbr.rel (0) target = $region37
    $region36: #{tpu_custom_call.1} parent=1 // pred_region
      _
    $region37: #{tpu_custom_call.1} parent=1 // pred_fallthru
      _
    // Predicated region
    $region38: #{tpu_custom_call.1} parent=1 // pred_check
      _
    $region39: #{tpu_custom_call.1} parent=1 // pred_check_branch
      %45 = sbr.rel (0) target = $region41
    $region40: #{tpu_custom_call.1} parent=1 // pred_region
      %46 = dma.done [#allocation3], 512
    $region41: #{tpu_custom_call.1} parent=1 // pred_fallthru
      _
    %v47 = vld [vmem:[%s0] sm:$0xff]
    %v48 = vld [vmem:[%s0 + $0x8] sm:$0xff]
    %v49 = vld [vmem:[%s0 + $0x10] sm:$0xff]
    %v50 = vld [vmem:[%s0 + $0x18] sm:$0xff]
    %v51 = vld [vmem:[%s0 + $0x20] sm:$0xff]
    %v52 = vld [vmem:[%s0 + $0x28] sm:$0xff]
    %v53 = vld [vmem:[%s0 + $0x30] sm:$0xff]
    %v54 = vld [vmem:[%s0 + $0x38] sm:$0xff]
    %v55 = vtanh.pop %v47
    %v56 = vtanh.pop %v48
    %v57 = vtanh.pop %v49
    %v58 = vtanh.pop %v50
    %v59 = vtanh.pop %v51
    %v60 = vtanh.pop %v52
    %v61 = vtanh.pop %v53
    %v62 = vtanh.pop %v54
    %v63 = vld [vmem:[%s1] sm:$0xff]
    %v64 = vld [vmem:[%s1 + $0x8] sm:$0xff]
    %v65 = vld [vmem:[%s1 + $0x10] sm:$0xff]
    %v66 = vld [vmem:[%s1 + $0x18] sm:$0xff]
    %v67 = vld [vmem:[%s3] sm:$0x1]
    %v69 = vlaneseq
    %v70 = vshrl.u32 %v69, 7
    %v71 = vsub.s32 0, %v70
    %v72 = vrot.slane %v67, %v71
    %vm74 = vcmask 261120
    %v76 = vsel %vm74, %v55, 0
    %v79 = vsel %vm74, %v56, 0
    %v82 = vsel %vm74, %v57, 0
    %v85 = vsel %vm74, %v58, 0
    %v88 = vsel %vm74, %v59, 0
    %v91 = vsel %vm74, %v60, 0
    %v94 = vsel %vm74, %v61, 0
    %v97 = vsel %vm74, %v62, 0
    %99 = vmatprep.subr.mxu0 0.0
    %100 = vmatpush1.msra.mxu0 %v63
    %101 = vmatprep.subr.mxu0 0.0
    %102 = vmatpush1.msra.mxu0 %v64
    %103 = vmatprep.subr.mxu0 0.0
    %104 = vmatpush1.msra.mxu0 %v65
    %105 = vmatprep.subr.mxu0 0.0
    %106 = vmatpush1.msra.mxu0 %v66
    %107 = vmatprep.subr.mxu0 0.0
    %108 = vmatpush1.msra.mxu0 0.0
    %109 = vmatprep.subr.mxu0 0.0
    %110 = vmatpush1.msra.mxu0 0.0
    %111 = vmatprep.subr.mxu0 0.0
    %112 = vmatpush1.msra.mxu0 0.0
    %113 = vmatprep.subr.mxu0 0.0
    %114 = vmatpush1.msra.mxu0 0.0
    %115 = vmatprep.subr.mxu0 0.0
    %116 = vmatpush1.msra.mxu0 0.0
    %117 = vmatprep.subr.mxu0 0.0
    %118 = vmatpush1.msra.mxu0 0.0
    %119 = vmatprep.subr.mxu0 0.0
    %120 = vmatpush1.msra.mxu0 0.0
    %121 = vmatprep.subr.mxu0 0.0
    %122 = vmatpush1.msra.mxu0 0.0
    %123 = vmatprep.subr.mxu0 0.0
    %124 = vmatpush1.msra.mxu0 0.0
    %125 = vmatprep.subr.mxu0 0.0
    %126 = vmatpush1.msra.mxu0 0.0
    %127 = vmatprep.subr.mxu0 0.0
    %128 = vmatpush1.msra.mxu0 0.0
    %129 = vmatprep.subr.mxu0 0.0
    %130 = vmatpush1.msra.mxu0 0.0
    %131 = vmatprep.subr.mxu0 0.0
    %132 = vmatpush1.msra.mxu0 0.0
    %133 = vmatprep.subr.mxu0 0.0
    %134 = vmatpush1.msra.mxu0 0.0
    %135 = vmatprep.subr.mxu0 0.0
    %136 = vmatpush1.msra.mxu0 0.0
    %137 = vmatprep.subr.mxu0 0.0
    %138 = vmatpush1.msra.mxu0 0.0
    %139 = vmatprep.subr.mxu0 0.0
    %140 = vmatpush1.msra.mxu0 0.0
    %141 = vmatprep.subr.mxu0 0.0
    %142 = vmatpush1.msra.mxu0 0.0
    %143 = vmatprep.subr.mxu0 0.0
    %144 = vmatpush1.msra.mxu0 0.0
    %145 = vmatprep.subr.mxu0 0.0
    %146 = vmatpush1.msra.mxu0 0.0
    %147 = vmatprep.subr.mxu0 0.0
    %148 = vmatpush1.msra.mxu0 0.0
    %149 = vmatprep.subr.mxu0 0.0
    %150 = vmatpush1.msra.mxu0 0.0
    %151 = vmatprep.subr.mxu0 0.0
    %152 = vmatpush1.msra.mxu0 0.0
    %153 = vmatprep.subr.mxu0 0.0
    %154 = vmatpush1.msra.mxu0 0.0
    %155 = vmatprep.subr.mxu0 0.0
    %156 = vmatpush1.msra.mxu0 0.0
    %157 = vmatprep.subr.mxu0 0.0
    %158 = vmatpush1.msra.mxu0 0.0
    %159 = vmatprep.subr.mxu0 0.0
    %160 = vmatpush1.msra.mxu0 0.0
    %161 = vmatprep.subr.mxu0 0.0
    %162 = vmatpush1.msra.mxu0 0.0
    %163 = vmatprep.mubr.f32.mxu0 0.0
    %164 = vmatmul.mubr.f32.gmra.mrb[0].mxu0 %v76
    %v165 = vpop.f32.mrb[0].mxu0
    %v166 = vadd.f32 %v72, %v165
    %v167 = vpop.f32.mrb[0].mxu0
    %168 = vmatprep.mubr.f32.mxu0 0.0
    %169 = vmatmul.mubr.f32.gmra.mrb[0].mxu0 %v79
    %v170 = vpop.f32.mrb[0].mxu0
    %v171 = vadd.f32 %v72, %v170
    %v172 = vpop.f32.mrb[0].mxu0
    %173 = vmatprep.mubr.f32.mxu0 0.0
    %174 = vmatmul.mubr.f32.gmra.mrb[0].mxu0 %v82
    %v175 = vpop.f32.mrb[0].mxu0
    %v176 = vadd.f32 %v72, %v175
    %v177 = vpop.f32.mrb[0].mxu0
    %178 = vmatprep.mubr.f32.mxu0 0.0
    %179 = vmatmul.mubr.f32.gmra.mrb[0].mxu0 %v85
    %v180 = vpop.f32.mrb[0].mxu0
    %v181 = vadd.f32 %v72, %v180
    %v182 = vpop.f32.mrb[0].mxu0
    %183 = vmatprep.mubr.f32.mxu0 0.0
    %184 = vmatmul.mubr.f32.gmra.mrb[0].mxu0 %v88
    %v185 = vpop.f32.mrb[0].mxu0
    %v186 = vadd.f32 %v72, %v185
    %v187 = vpop.f32.mrb[0].mxu0
    %188 = vmatprep.mubr.f32.mxu0 0.0
    %189 = vmatmul.mubr.f32.gmra.mrb[0].mxu0 %v91
    %v190 = vpop.f32.mrb[0].mxu0
    %v191 = vadd.f32 %v72, %v190
    %v192 = vpop.f32.mrb[0].mxu0
    %193 = vmatprep.mubr.f32.mxu0 0.0
    %194 = vmatmul.mubr.f32.gmra.mrb[0].mxu0 %v94
    %v195 = vpop.f32.mrb[0].mxu0
    %v196 = vadd.f32 %v72, %v195
    %v197 = vpop.f32.mrb[0].mxu0
    %198 = vmatprep.mubr.f32.mxu0 0.0
    %199 = vmatmul.mubr.f32.gmra.mrb[0].mxu0 %v97
    %v200 = vpop.f32.mrb[0].mxu0
    %v201 = vadd.f32 %v72, %v200
    %v202 = vpop.f32.mrb[0].mxu0
    %203 = vdwg.mxu0
    %v204 = vld [vmem:[%s2] sm:$0xff]
    %v205 = vld [vmem:[%s2 + $0x8] sm:$0xff]
    %v206 = vld [vmem:[%s2 + $0x10] sm:$0xff]
    %v207 = vld [vmem:[%s2 + $0x18] sm:$0xff]
    %v209 = vsel %vm74, 0.0, 0
    %211 = vmatprep.subr.mxu0 0.0
    %212 = vmatpush1.msra.mxu0 %v204
    %213 = vmatprep.subr.mxu0 0.0
    %214 = vmatpush1.msra.mxu0 %v205
    %215 = vmatprep.subr.mxu0 0.0
    %216 = vmatpush1.msra.mxu0 %v206
    %217 = vmatprep.subr.mxu0 0.0
    %218 = vmatpush1.msra.mxu0 %v207
    %219 = vmatprep.subr.mxu0 0.0
    %220 = vmatpush1.msra.mxu0 0.0
    %221 = vmatprep.subr.mxu0 0.0
    %222 = vmatpush1.msra.mxu0 0.0
    %223 = vmatprep.subr.mxu0 0.0
    %224 = vmatpush1.msra.mxu0 0.0
    %225 = vmatprep.subr.mxu0 0.0
    %226 = vmatpush1.msra.mxu0 0.0
    %227 = vmatprep.subr.mxu0 0.0
    %228 = vmatpush1.msra.mxu0 0.0
    %229 = vmatprep.subr.mxu0 0.0
    %230 = vmatpush1.msra.mxu0 0.0
    %231 = vmatprep.subr.mxu0 0.0
    %232 = vmatpush1.msra.mxu0 0.0
    %233 = vmatprep.subr.mxu0 0.0
    %234 = vmatpush1.msra.mxu0 0.0
    %235 = vmatprep.subr.mxu0 0.0
    %236 = vmatpush1.msra.mxu0 0.0
    %237 = vmatprep.subr.mxu0 0.0
    %238 = vmatpush1.msra.mxu0 0.0
    %239 = vmatprep.subr.mxu0 0.0
    %240 = vmatpush1.msra.mxu0 0.0
    %241 = vmatprep.subr.mxu0 0.0
    %242 = vmatpush1.msra.mxu0 0.0
    %243 = vmatprep.subr.mxu0 0.0
    %244 = vmatpush1.msra.mxu0 0.0
    %245 = vmatprep.subr.mxu0 0.0
    %246 = vmatpush1.msra.mxu0 0.0
    %247 = vmatprep.subr.mxu0 0.0
    %248 = vmatpush1.msra.mxu0 0.0
    %249 = vmatprep.subr.mxu0 0.0
    %250 = vmatpush1.msra.mxu0 0.0
    %251 = vmatprep.subr.mxu0 0.0
    %252 = vmatpush1.msra.mxu0 0.0
    %253 = vmatprep.subr.mxu0 0.0
    %254 = vmatpush1.msra.mxu0 0.0
    %255 = vmatprep.subr.mxu0 0.0
    %256 = vmatpush1.msra.mxu0 0.0
    %257 = vmatprep.subr.mxu0 0.0
    %258 = vmatpush1.msra.mxu0 0.0
    %259 = vmatprep.subr.mxu0 0.0
    %260 = vmatpush1.msra.mxu0 0.0
    %261 = vmatprep.subr.mxu0 0.0
    %262 = vmatpush1.msra.mxu0 0.0
    %263 = vmatprep.subr.mxu0 0.0
    %264 = vmatpush1.msra.mxu0 0.0
    %265 = vmatprep.subr.mxu0 0.0
    %266 = vmatpush1.msra.mxu0 0.0
    %267 = vmatprep.subr.mxu0 0.0
    %268 = vmatpush1.msra.mxu0 0.0
    %269 = vmatprep.subr.mxu0 0.0
    %270 = vmatpush1.msra.mxu0 0.0
    %271 = vmatprep.subr.mxu0 0.0
    %272 = vmatpush1.msra.mxu0 0.0
    %273 = vmatprep.subr.mxu0 0.0
    %274 = vmatpush1.msra.mxu0 0.0
    %275 = vmatprep.mubr.f32.mxu0 0.0
    %276 = vmatmul.mubr.f32.gmra.mrb[0].mxu0 %v209
    %v277 = vpop.f32.mrb[0].mxu0
    %v278 = vadd.f32 0.0, %v277
    %v279 = vpop.f32.mrb[0].mxu0
    %280 = vdwg.mxu0
    %v281 = vadd.f32 %v166, %v278
    %v282 = vxor.u32 %v281, 2147483648
    %v283 = vmul.f32 %v282, 1.442695
    %v284 = vpow.pop %v283
    %v285 = vadd.f32 %v284, 1.0
    %v286 = vrcp.pop %v285
    %v287 = vmul.f32 1.0, %v286
    %v288 = vtanh.pop %v281
    %v289 = vmul.f32 %v287, 0.0
    %291 = vrot.lane.b32.xlu0 %v288, 32
    %v292 = vpop.permute.xlu0 %291
    %v294 = vmul.f32 %v287, %v292
    %296 = vrot.lane.b32.xlu0 %v294, 32
    %v297 = vpop.permute.xlu0 %296
    %v299 = vadd.f32 %v289, %v297
    %v300 = vtanh.pop %v299
    %302 = vrot.lane.b32.xlu0 %v300, 32
    %v303 = vpop.permute.xlu0 %302
    %v305 = vmul.f32 %v287, %v303
    %307 = vrot.lane.b32.xlu0 %v305, 64
    %v308 = vpop.permute.xlu0 %307
    %v309 = vsel %vm74, %v308, 0
    %311 = vmatprep.subr.mxu0 0.0
    %312 = vmatpush1.msra.mxu0 %v204
    %313 = vmatprep.subr.mxu0 0.0
    %314 = vmatpush1.msra.mxu0 %v205
    %315 = vmatprep.subr.mxu0 0.0
    %316 = vmatpush1.msra.mxu0 %v206
    %317 = vmatprep.subr.mxu0 0.0
    %318 = vmatpush1.msra.mxu0 %v207
    %319 = vmatprep.subr.mxu0 0.0
    %320 = vmatpush1.msra.mxu0 0.0
    %321 = vmatprep.subr.mxu0 0.0
    %322 = vmatpush1.msra.mxu0 0.0
    %323 = vmatprep.subr.mxu0 0.0
    %324 = vmatpush1.msra.mxu0 0.0
    %325 = vmatprep.subr.mxu0 0.0
    %326 = vmatpush1.msra.mxu0 0.0
    %327 = vmatprep.subr.mxu0 0.0
    %328 = vmatpush1.msra.mxu0 0.0
    %329 = vmatprep.subr.mxu0 0.0
    %330 = vmatpush1.msra.mxu0 0.0
    %331 = vmatprep.subr.mxu0 0.0
    %332 = vmatpush1.msra.mxu0 0.0
    %333 = vmatprep.subr.mxu0 0.0
    %334 = vmatpush1.msra.mxu0 0.0
    %335 = vmatprep.subr.mxu0 0.0
    %336 = vmatpush1.msra.mxu0 0.0
    %337 = vmatprep.subr.mxu0 0.0
    %338 = vmatpush1.msra.mxu0 0.0
    %339 = vmatprep.subr.mxu0 0.0
    %340 = vmatpush1.msra.mxu0 0.0
    %341 = vmatprep.subr.mxu0 0.0
    %342 = vmatpush1.msra.mxu0 0.0
    %343 = vmatprep.subr.mxu0 0.0
    %344 = vmatpush1.msra.mxu0 0.0
    %345 = vmatprep.subr.mxu0 0.0
    %346 = vmatpush1.msra.mxu0 0.0
    %347 = vmatprep.subr.mxu0 0.0
    %348 = vmatpush1.msra.mxu0 0.0
    %349 = vmatprep.subr.mxu0 0.0
    %350 = vmatpush1.msra.mxu0 0.0
    %351 = vmatprep.subr.mxu0 0.0
    %352 = vmatpush1.msra.mxu0 0.0
    %353 = vmatprep.subr.mxu0 0.0
    %354 = vmatpush1.msra.mxu0 0.0
    %355 = vmatprep.subr.mxu0 0.0
    %356 = vmatpush1.msra.mxu0 0.0
    %357 = vmatprep.subr.mxu0 0.0
    %358 = vmatpush1.msra.mxu0 0.0
    %359 = vmatprep.subr.mxu0 0.0
    %360 = vmatpush1.msra.mxu0 0.0
    %361 = vmatprep.subr.mxu0 0.0
    %362 = vmatpush1.msra.mxu0 0.0
    %363 = vmatprep.subr.mxu0 0.0
    %364 = vmatpush1.msra.mxu0 0.0
    %365 = vmatprep.subr.mxu0 0.0
    %366 = vmatpush1.msra.mxu0 0.0
    %367 = vmatprep.subr.mxu0 0.0
    %368 = vmatpush1.msra.mxu0 0.0
    %369 = vmatprep.subr.mxu0 0.0
    %370 = vmatpush1.msra.mxu0 0.0
    %371 = vmatprep.subr.mxu0 0.0
    %372 = vmatpush1.msra.mxu0 0.0
    %373 = vmatprep.subr.mxu0 0.0
    %374 = vmatpush1.msra.mxu0 0.0
    %375 = vmatprep.mubr.f32.mxu0 0.0
    %376 = vmatmul.mubr.f32.gmra.mrb[0].mxu0 %v309
    %v377 = vpop.f32.mrb[0].mxu0
    %v378 = vadd.f32 0.0, %v377
    %v379 = vpop.f32.mrb[0].mxu0
    %380 = vdwg.mxu0
    %v381 = vadd.f32 %v171, %v378
    %v382 = vxor.u32 %v381, 2147483648
    %v383 = vmul.f32 %v382, 1.442695
    %v384 = vpow.pop %v383
    %v385 = vadd.f32 %v384, 1.0
    %v386 = vrcp.pop %v385
    %v387 = vmul.f32 1.0, %v386
    %v388 = vtanh.pop %v381
    %v389 = vmul.f32 %v387, %v299
    %391 = vrot.lane.b32.xlu0 %v388, 32
    %v392 = vpop.permute.xlu0 %391
    %v394 = vmul.f32 %v387, %v392
    %396 = vrot.lane.b32.xlu0 %v394, 32
    %v397 = vpop.permute.xlu0 %396
    %v399 = vadd.f32 %v389, %v397
    %v400 = vtanh.pop %v399
    %402 = vrot.lane.b32.xlu0 %v400, 32
    %v403 = vpop.permute.xlu0 %402
    %v405 = vmul.f32 %v387, %v403
    %407 = vrot.lane.b32.xlu0 %v405, 64
    %v408 = vpop.permute.xlu0 %407
    %v409 = vsel %vm74, %v408, 0
    %411 = vmatprep.subr.mxu0 0.0
    %412 = vmatpush1.msra.mxu0 %v204
    %413 = vmatprep.subr.mxu0 0.0
    %414 = vmatpush1.msra.mxu0 %v205
    %415 = vmatprep.subr.mxu0 0.0
    %416 = vmatpush1.msra.mxu0 %v206
    %417 = vmatprep.subr.mxu0 0.0
    %418 = vmatpush1.msra.mxu0 %v207
    %419 = vmatprep.subr.mxu0 0.0
    %420 = vmatpush1.msra.mxu0 0.0
    %421 = vmatprep.subr.mxu0 0.0
    %422 = vmatpush1.msra.mxu0 0.0
    %423 = vmatprep.subr.mxu0 0.0
    %424 = vmatpush1.msra.mxu0 0.0
    %425 = vmatprep.subr.mxu0 0.0
    %426 = vmatpush1.msra.mxu0 0.0
    %427 = vmatprep.subr.mxu0 0.0
    %428 = vmatpush1.msra.mxu0 0.0
    %429 = vmatprep.subr.mxu0 0.0
    %430 = vmatpush1.msra.mxu0 0.0
    %431 = vmatprep.subr.mxu0 0.0
    %432 = vmatpush1.msra.mxu0 0.0
    %433 = vmatprep.subr.mxu0 0.0
    %434 = vmatpush1.msra.mxu0 0.0
    %435 = vmatprep.subr.mxu0 0.0
    %436 = vmatpush1.msra.mxu0 0.0
    %437 = vmatprep.subr.mxu0 0.0
    %438 = vmatpush1.msra.mxu0 0.0
    %439 = vmatprep.subr.mxu0 0.0
    %440 = vmatpush1.msra.mxu0 0.0
    %441 = vmatprep.subr.mxu0 0.0
    %442 = vmatpush1.msra.mxu0 0.0
    %443 = vmatprep.subr.mxu0 0.0
    %444 = vmatpush1.msra.mxu0 0.0
    %445 = vmatprep.subr.mxu0 0.0
    %446 = vmatpush1.msra.mxu0 0.0
    %447 = vmatprep.subr.mxu0 0.0
    %448 = vmatpush1.msra.mxu0 0.0
    %449 = vmatprep.subr.mxu0 0.0
    %450 = vmatpush1.msra.mxu0 0.0
    %451 = vmatprep.subr.mxu0 0.0
    %452 = vmatpush1.msra.mxu0 0.0
    %453 = vmatprep.subr.mxu0 0.0
    %454 = vmatpush1.msra.mxu0 0.0
    %455 = vmatprep.subr.mxu0 0.0
    %456 = vmatpush1.msra.mxu0 0.0
    %457 = vmatprep.subr.mxu0 0.0
    %458 = vmatpush1.msra.mxu0 0.0
    %459 = vmatprep.subr.mxu0 0.0
    %460 = vmatpush1.msra.mxu0 0.0
    %461 = vmatprep.subr.mxu0 0.0
    %462 = vmatpush1.msra.mxu0 0.0
    %463 = vmatprep.subr.mxu0 0.0
    %464 = vmatpush1.msra.mxu0 0.0
    %465 = vmatprep.subr.mxu0 0.0
    %466 = vmatpush1.msra.mxu0 0.0
    %467 = vmatprep.subr.mxu0 0.0
    %468 = vmatpush1.msra.mxu0 0.0
    %469 = vmatprep.subr.mxu0 0.0
    %470 = vmatpush1.msra.mxu0 0.0
    %471 = vmatprep.subr.mxu0 0.0
    %472 = vmatpush1.msra.mxu0 0.0
    %473 = vmatprep.subr.mxu0 0.0
    %474 = vmatpush1.msra.mxu0 0.0
    %475 = vmatprep.mubr.f32.mxu0 0.0
    %476 = vmatmul.mubr.f32.gmra.mrb[0].mxu0 %v409
    %v477 = vpop.f32.mrb[0].mxu0
    %v478 = vadd.f32 0.0, %v477
    %v479 = vpop.f32.mrb[0].mxu0
    %480 = vdwg.mxu0
    %v481 = vadd.f32 %v176, %v478
    %v482 = vxor.u32 %v481, 2147483648
    %v483 = vmul.f32 %v482, 1.442695
    %v484 = vpow.pop %v483
    %v485 = vadd.f32 %v484, 1.0
    %v486 = vrcp.pop %v485
    %v487 = vmul.f32 1.0, %v486
    %v488 = vtanh.pop %v481
    %v489 = vmul.f32 %v487, %v399
    %491 = vrot.lane.b32.xlu0 %v488, 32
    %v492 = vpop.permute.xlu0 %491
    %v494 = vmul.f32 %v487, %v492
    %496 = vrot.lane.b32.xlu0 %v494, 32
    %v497 = vpop.permute.xlu0 %496
    %v499 = vadd.f32 %v489, %v497
    %v500 = vtanh.pop %v499
    %502 = vrot.lane.b32.xlu0 %v500, 32
    %v503 = vpop.permute.xlu0 %502
    %v505 = vmul.f32 %v487, %v503
    %507 = vrot.lane.b32.xlu0 %v505, 64
    %v508 = vpop.permute.xlu0 %507
    %v509 = vsel %vm74, %v508, 0
    %511 = vmatprep.subr.mxu0 0.0
    %512 = vmatpush1.msra.mxu0 %v204
    %513 = vmatprep.subr.mxu0 0.0
    %514 = vmatpush1.msra.mxu0 %v205
    %515 = vmatprep.subr.mxu0 0.0
    %516 = vmatpush1.msra.mxu0 %v206
    %517 = vmatprep.subr.mxu0 0.0
    %518 = vmatpush1.msra.mxu0 %v207
    %519 = vmatprep.subr.mxu0 0.0
    %520 = vmatpush1.msra.mxu0 0.0
    %521 = vmatprep.subr.mxu0 0.0
    %522 = vmatpush1.msra.mxu0 0.0
    %523 = vmatprep.subr.mxu0 0.0
    %524 = vmatpush1.msra.mxu0 0.0
    %525 = vmatprep.subr.mxu0 0.0
    %526 = vmatpush1.msra.mxu0 0.0
    %527 = vmatprep.subr.mxu0 0.0
    %528 = vmatpush1.msra.mxu0 0.0
    %529 = vmatprep.subr.mxu0 0.0
    %530 = vmatpush1.msra.mxu0 0.0
    %531 = vmatprep.subr.mxu0 0.0
    %532 = vmatpush1.msra.mxu0 0.0
    %533 = vmatprep.subr.mxu0 0.0
    %534 = vmatpush1.msra.mxu0 0.0
    %535 = vmatprep.subr.mxu0 0.0
    %536 = vmatpush1.msra.mxu0 0.0
    %537 = vmatprep.subr.mxu0 0.0
    %538 = vmatpush1.msra.mxu0 0.0
    %539 = vmatprep.subr.mxu0 0.0
    %540 = vmatpush1.msra.mxu0 0.0
    %541 = vmatprep.subr.mxu0 0.0
    %542 = vmatpush1.msra.mxu0 0.0
    %543 = vmatprep.subr.mxu0 0.0
    %544 = vmatpush1.msra.mxu0 0.0
    %545 = vmatprep.subr.mxu0 0.0
    %546 = vmatpush1.msra.mxu0 0.0
    %547 = vmatprep.subr.mxu0 0.0
    %548 = vmatpush1.msra.mxu0 0.0
    %549 = vmatprep.subr.mxu0 0.0
    %550 = vmatpush1.msra.mxu0 0.0
    %551 = vmatprep.subr.mxu0 0.0
    %552 = vmatpush1.msra.mxu0 0.0
    %553 = vmatprep.subr.mxu0 0.0
    %554 = vmatpush1.msra.mxu0 0.0
    %555 = vmatprep.subr.mxu0 0.0
    %556 = vmatpush1.msra.mxu0 0.0
    %557 = vmatprep.subr.mxu0 0.0
    %558 = vmatpush1.msra.mxu0 0.0
    %559 = vmatprep.subr.mxu0 0.0
    %560 = vmatpush1.msra.mxu0 0.0
    %561 = vmatprep.subr.mxu0 0.0
    %562 = vmatpush1.msra.mxu0 0.0
    %563 = vmatprep.subr.mxu0 0.0
    %564 = vmatpush1.msra.mxu0 0.0
    %565 = vmatprep.subr.mxu0 0.0
    %566 = vmatpush1.msra.mxu0 0.0
    %567 = vmatprep.subr.mxu0 0.0
    %568 = vmatpush1.msra.mxu0 0.0
    %569 = vmatprep.subr.mxu0 0.0
    %570 = vmatpush1.msra.mxu0 0.0
    %571 = vmatprep.subr.mxu0 0.0
    %572 = vmatpush1.msra.mxu0 0.0
    %573 = vmatprep.subr.mxu0 0.0
    %574 = vmatpush1.msra.mxu0 0.0
    %575 = vmatprep.mubr.f32.mxu0 0.0
    %576 = vmatmul.mubr.f32.gmra.mrb[0].mxu0 %v509
    %v577 = vpop.f32.mrb[0].mxu0
    %v578 = vadd.f32 0.0, %v577
    %v579 = vpop.f32.mrb[0].mxu0
    %580 = vdwg.mxu0
    %v581 = vadd.f32 %v181, %v578
    %v582 = vxor.u32 %v581, 2147483648
    %v583 = vmul.f32 %v582, 1.442695
    %v584 = vpow.pop %v583
    %v585 = vadd.f32 %v584, 1.0
    %v586 = vrcp.pop %v585
    %v587 = vmul.f32 1.0, %v586
    %v588 = vtanh.pop %v581
    %v589 = vmul.f32 %v587, %v499
    %591 = vrot.lane.b32.xlu0 %v588, 32
    %v592 = vpop.permute.xlu0 %591
    %v594 = vmul.f32 %v587, %v592
    %596 = vrot.lane.b32.xlu0 %v594, 32
    %v597 = vpop.permute.xlu0 %596
    %v599 = vadd.f32 %v589, %v597
    %v600 = vtanh.pop %v599
    %602 = vrot.lane.b32.xlu0 %v600, 32
    %v603 = vpop.permute.xlu0 %602
    %v605 = vmul.f32 %v587, %v603
    %607 = vrot.lane.b32.xlu0 %v605, 64
    %v608 = vpop.permute.xlu0 %607
    %v609 = vsel %vm74, %v608, 0
    %611 = vmatprep.subr.mxu0 0.0
    %612 = vmatpush1.msra.mxu0 %v204
    %613 = vmatprep.subr.mxu0 0.0
    %614 = vmatpush1.msra.mxu0 %v205
    %615 = vmatprep.subr.mxu0 0.0
    %616 = vmatpush1.msra.mxu0 %v206
    %617 = vmatprep.subr.mxu0 0.0
    %618 = vmatpush1.msra.mxu0 %v207
    %619 = vmatprep.subr.mxu0 0.0
    %620 = vmatpush1.msra.mxu0 0.0
    %621 = vmatprep.subr.mxu0 0.0
    %622 = vmatpush1.msra.mxu0 0.0
    %623 = vmatprep.subr.mxu0 0.0
    %624 = vmatpush1.msra.mxu0 0.0
    %625 = vmatprep.subr.mxu0 0.0
    %626 = vmatpush1.msra.mxu0 0.0
    %627 = vmatprep.subr.mxu0 0.0
    %628 = vmatpush1.msra.mxu0 0.0
    %629 = vmatprep.subr.mxu0 0.0
    %630 = vmatpush1.msra.mxu0 0.0
    %631 = vmatprep.subr.mxu0 0.0
    %632 = vmatpush1.msra.mxu0 0.0
    %633 = vmatprep.subr.mxu0 0.0
    %634 = vmatpush1.msra.mxu0 0.0
    %635 = vmatprep.subr.mxu0 0.0
    %636 = vmatpush1.msra.mxu0 0.0
    %637 = vmatprep.subr.mxu0 0.0
    %638 = vmatpush1.msra.mxu0 0.0
    %639 = vmatprep.subr.mxu0 0.0
    %640 = vmatpush1.msra.mxu0 0.0
    %641 = vmatprep.subr.mxu0 0.0
    %642 = vmatpush1.msra.mxu0 0.0
    %643 = vmatprep.subr.mxu0 0.0
    %644 = vmatpush1.msra.mxu0 0.0
    %645 = vmatprep.subr.mxu0 0.0
    %646 = vmatpush1.msra.mxu0 0.0
    %647 = vmatprep.subr.mxu0 0.0
    %648 = vmatpush1.msra.mxu0 0.0
    %649 = vmatprep.subr.mxu0 0.0
    %650 = vmatpush1.msra.mxu0 0.0
    %651 = vmatprep.subr.mxu0 0.0
    %652 = vmatpush1.msra.mxu0 0.0
    %653 = vmatprep.subr.mxu0 0.0
    %654 = vmatpush1.msra.mxu0 0.0
    %655 = vmatprep.subr.mxu0 0.0
    %656 = vmatpush1.msra.mxu0 0.0
    %657 = vmatprep.subr.mxu0 0.0
    %658 = vmatpush1.msra.mxu0 0.0
    %659 = vmatprep.subr.mxu0 0.0
    %660 = vmatpush1.msra.mxu0 0.0
    %661 = vmatprep.subr.mxu0 0.0
    %662 = vmatpush1.msra.mxu0 0.0
    %663 = vmatprep.subr.mxu0 0.0
    %664 = vmatpush1.msra.mxu0 0.0
    %665 = vmatprep.subr.mxu0 0.0
    %666 = vmatpush1.msra.mxu0 0.0
    %667 = vmatprep.subr.mxu0 0.0
    %668 = vmatpush1.msra.mxu0 0.0
    %669 = vmatprep.subr.mxu0 0.0
    %670 = vmatpush1.msra.mxu0 0.0
    %671 = vmatprep.subr.mxu0 0.0
    %672 = vmatpush1.msra.mxu0 0.0
    %673 = vmatprep.subr.mxu0 0.0
    %674 = vmatpush1.msra.mxu0 0.0
    %675 = vmatprep.mubr.f32.mxu0 0.0
    %676 = vmatmul.mubr.f32.gmra.mrb[0].mxu0 %v609
    %v677 = vpop.f32.mrb[0].mxu0
    %v678 = vadd.f32 0.0, %v677
    %v679 = vpop.f32.mrb[0].mxu0
    %680 = vdwg.mxu0
    %v681 = vadd.f32 %v186, %v678
    %v682 = vxor.u32 %v681, 2147483648
    %v683 = vmul.f32 %v682, 1.442695
    %v684 = vpow.pop %v683
    %v685 = vadd.f32 %v684, 1.0
    %v686 = vrcp.pop %v685
    %v687 = vmul.f32 1.0, %v686
    %v688 = vtanh.pop %v681
    %v689 = vmul.f32 %v687, %v599
    %691 = vrot.lane.b32.xlu0 %v688, 32
    %v692 = vpop.permute.xlu0 %691
    %v694 = vmul.f32 %v687, %v692
    %696 = vrot.lane.b32.xlu0 %v694, 32
    %v697 = vpop.permute.xlu0 %696
    %v699 = vadd.f32 %v689, %v697
    %v700 = vtanh.pop %v699
    %702 = vrot.lane.b32.xlu0 %v700, 32
    %v703 = vpop.permute.xlu0 %702
    %v705 = vmul.f32 %v687, %v703
    %707 = vrot.lane.b32.xlu0 %v705, 64
    %v708 = vpop.permute.xlu0 %707
    %v709 = vsel %vm74, %v708, 0
    %711 = vmatprep.subr.mxu0 0.0
    %712 = vmatpush1.msra.mxu0 %v204
    %713 = vmatprep.subr.mxu0 0.0
    %714 = vmatpush1.msra.mxu0 %v205
    %715 = vmatprep.subr.mxu0 0.0
    %716 = vmatpush1.msra.mxu0 %v206
    %717 = vmatprep.subr.mxu0 0.0
    %718 = vmatpush1.msra.mxu0 %v207
    %719 = vmatprep.subr.mxu0 0.0
    %720 = vmatpush1.msra.mxu0 0.0
    %721 = vmatprep.subr.mxu0 0.0
    %722 = vmatpush1.msra.mxu0 0.0
    %723 = vmatprep.subr.mxu0 0.0
    %724 = vmatpush1.msra.mxu0 0.0
    %725 = vmatprep.subr.mxu0 0.0
    %726 = vmatpush1.msra.mxu0 0.0
    %727 = vmatprep.subr.mxu0 0.0
    %728 = vmatpush1.msra.mxu0 0.0
    %729 = vmatprep.subr.mxu0 0.0
    %730 = vmatpush1.msra.mxu0 0.0
    %731 = vmatprep.subr.mxu0 0.0
    %732 = vmatpush1.msra.mxu0 0.0
    %733 = vmatprep.subr.mxu0 0.0
    %734 = vmatpush1.msra.mxu0 0.0
    %735 = vmatprep.subr.mxu0 0.0
    %736 = vmatpush1.msra.mxu0 0.0
    %737 = vmatprep.subr.mxu0 0.0
    %738 = vmatpush1.msra.mxu0 0.0
    %739 = vmatprep.subr.mxu0 0.0
    %740 = vmatpush1.msra.mxu0 0.0
    %741 = vmatprep.subr.mxu0 0.0
    %742 = vmatpush1.msra.mxu0 0.0
    %743 = vmatprep.subr.mxu0 0.0
    %744 = vmatpush1.msra.mxu0 0.0
    %745 = vmatprep.subr.mxu0 0.0
    %746 = vmatpush1.msra.mxu0 0.0
    %747 = vmatprep.subr.mxu0 0.0
    %748 = vmatpush1.msra.mxu0 0.0
    %749 = vmatprep.subr.mxu0 0.0
    %750 = vmatpush1.msra.mxu0 0.0
    %751 = vmatprep.subr.mxu0 0.0
    %752 = vmatpush1.msra.mxu0 0.0
    %753 = vmatprep.subr.mxu0 0.0
    %754 = vmatpush1.msra.mxu0 0.0
    %755 = vmatprep.subr.mxu0 0.0
    %756 = vmatpush1.msra.mxu0 0.0
    %757 = vmatprep.subr.mxu0 0.0
    %758 = vmatpush1.msra.mxu0 0.0
    %759 = vmatprep.subr.mxu0 0.0
    %760 = vmatpush1.msra.mxu0 0.0
    %761 = vmatprep.subr.mxu0 0.0
    %762 = vmatpush1.msra.mxu0 0.0
    %763 = vmatprep.subr.mxu0 0.0
    %764 = vmatpush1.msra.mxu0 0.0
    %765 = vmatprep.subr.mxu0 0.0
    %766 = vmatpush1.msra.mxu0 0.0
    %767 = vmatprep.subr.mxu0 0.0
    %768 = vmatpush1.msra.mxu0 0.0
    %769 = vmatprep.subr.mxu0 0.0
    %770 = vmatpush1.msra.mxu0 0.0
    %771 = vmatprep.subr.mxu0 0.0
    %772 = vmatpush1.msra.mxu0 0.0
    %773 = vmatprep.subr.mxu0 0.0
    %774 = vmatpush1.msra.mxu0 0.0
    %775 = vmatprep.mubr.f32.mxu0 0.0
    %776 = vmatmul.mubr.f32.gmra.mrb[0].mxu0 %v709
    %v777 = vpop.f32.mrb[0].mxu0
    %v778 = vadd.f32 0.0, %v777
    %v779 = vpop.f32.mrb[0].mxu0
    %780 = vdwg.mxu0
    %v781 = vadd.f32 %v191, %v778
    %v782 = vxor.u32 %v781, 2147483648
    %v783 = vmul.f32 %v782, 1.442695
    %v784 = vpow.pop %v783
    %v785 = vadd.f32 %v784, 1.0
    %v786 = vrcp.pop %v785
    %v787 = vmul.f32 1.0, %v786
    %v788 = vtanh.pop %v781
    %v789 = vmul.f32 %v787, %v699
    %791 = vrot.lane.b32.xlu0 %v788, 32
    %v792 = vpop.permute.xlu0 %791
    %v794 = vmul.f32 %v787, %v792
    %796 = vrot.lane.b32.xlu0 %v794, 32
    %v797 = vpop.permute.xlu0 %796
    %v799 = vadd.f32 %v789, %v797
    %v800 = vtanh.pop %v799
    %802 = vrot.lane.b32.xlu0 %v800, 32
    %v803 = vpop.permute.xlu0 %802
    %v805 = vmul.f32 %v787, %v803
    %807 = vrot.lane.b32.xlu0 %v805, 64
    %v808 = vpop.permute.xlu0 %807
    %v809 = vsel %vm74, %v808, 0
    %811 = vmatprep.subr.mxu0 0.0
    %812 = vmatpush1.msra.mxu0 %v204
    %813 = vmatprep.subr.mxu0 0.0
    %814 = vmatpush1.msra.mxu0 %v205
    %815 = vmatprep.subr.mxu0 0.0
    %816 = vmatpush1.msra.mxu0 %v206
    %817 = vmatprep.subr.mxu0 0.0
    %818 = vmatpush1.msra.mxu0 %v207
    %819 = vmatprep.subr.mxu0 0.0
    %820 = vmatpush1.msra.mxu0 0.0
    %821 = vmatprep.subr.mxu0 0.0
    %822 = vmatpush1.msra.mxu0 0.0
    %823 = vmatprep.subr.mxu0 0.0
    %824 = vmatpush1.msra.mxu0 0.0
    %825 = vmatprep.subr.mxu0 0.0
    %826 = vmatpush1.msra.mxu0 0.0
    %827 = vmatprep.subr.mxu0 0.0
    %828 = vmatpush1.msra.mxu0 0.0
    %829 = vmatprep.subr.mxu0 0.0
    %830 = vmatpush1.msra.mxu0 0.0
    %831 = vmatprep.subr.mxu0 0.0
    %832 = vmatpush1.msra.mxu0 0.0
    %833 = vmatprep.subr.mxu0 0.0
    %834 = vmatpush1.msra.mxu0 0.0
    %835 = vmatprep.subr.mxu0 0.0
    %836 = vmatpush1.msra.mxu0 0.0
    %837 = vmatprep.subr.mxu0 0.0
    %838 = vmatpush1.msra.mxu0 0.0
    %839 = vmatprep.subr.mxu0 0.0
    %840 = vmatpush1.msra.mxu0 0.0
    %841 = vmatprep.subr.mxu0 0.0
    %842 = vmatpush1.msra.mxu0 0.0
    %843 = vmatprep.subr.mxu0 0.0
    %844 = vmatpush1.msra.mxu0 0.0
    %845 = vmatprep.subr.mxu0 0.0
    %846 = vmatpush1.msra.mxu0 0.0
    %847 = vmatprep.subr.mxu0 0.0
    %848 = vmatpush1.msra.mxu0 0.0
    %849 = vmatprep.subr.mxu0 0.0
    %850 = vmatpush1.msra.mxu0 0.0
    %851 = vmatprep.subr.mxu0 0.0
    %852 = vmatpush1.msra.mxu0 0.0
    %853 = vmatprep.subr.mxu0 0.0
    %854 = vmatpush1.msra.mxu0 0.0
    %855 = vmatprep.subr.mxu0 0.0
    %856 = vmatpush1.msra.mxu0 0.0
    %857 = vmatprep.subr.mxu0 0.0
    %858 = vmatpush1.msra.mxu0 0.0
    %859 = vmatprep.subr.mxu0 0.0
    %860 = vmatpush1.msra.mxu0 0.0
    %861 = vmatprep.subr.mxu0 0.0
    %862 = vmatpush1.msra.mxu0 0.0
    %863 = vmatprep.subr.mxu0 0.0
    %864 = vmatpush1.msra.mxu0 0.0
    %865 = vmatprep.subr.mxu0 0.0
    %866 = vmatpush1.msra.mxu0 0.0
    %867 = vmatprep.subr.mxu0 0.0
    %868 = vmatpush1.msra.mxu0 0.0
    %869 = vmatprep.subr.mxu0 0.0
    %870 = vmatpush1.msra.mxu0 0.0
    %871 = vmatprep.subr.mxu0 0.0
    %872 = vmatpush1.msra.mxu0 0.0
    %873 = vmatprep.subr.mxu0 0.0
    %874 = vmatpush1.msra.mxu0 0.0
    %875 = vmatprep.mubr.f32.mxu0 0.0
    %876 = vmatmul.mubr.f32.gmra.mrb[0].mxu0 %v809
    %v877 = vpop.f32.mrb[0].mxu0
    %v878 = vadd.f32 0.0, %v877
    %v879 = vpop.f32.mrb[0].mxu0
    %880 = vdwg.mxu0
    %v881 = vadd.f32 %v196, %v878
    %v882 = vxor.u32 %v881, 2147483648
    %v883 = vmul.f32 %v882, 1.442695
    %v884 = vpow.pop %v883
    %v885 = vadd.f32 %v884, 1.0
    %v886 = vrcp.pop %v885
    %v887 = vmul.f32 1.0, %v886
    %v888 = vtanh.pop %v881
    %v889 = vmul.f32 %v887, %v799
    %891 = vrot.lane.b32.xlu0 %v888, 32
    %v892 = vpop.permute.xlu0 %891
    %v894 = vmul.f32 %v887, %v892
    %896 = vrot.lane.b32.xlu0 %v894, 32
    %v897 = vpop.permute.xlu0 %896
    %v899 = vadd.f32 %v889, %v897
    %v900 = vtanh.pop %v899
    %902 = vrot.lane.b32.xlu0 %v900, 32
    %v903 = vpop.permute.xlu0 %902
    %v905 = vmul.f32 %v887, %v903
    %907 = vrot.lane.b32.xlu0 %v905, 64
    %v908 = vpop.permute.xlu0 %907
    %v909 = vsel %vm74, %v908, 0
    %911 = vmatprep.subr.mxu0 0.0
    %912 = vmatpush1.msra.mxu0 %v204
    %913 = vmatprep.subr.mxu0 0.0
    %914 = vmatpush1.msra.mxu0 %v205
    %915 = vmatprep.subr.mxu0 0.0
    %916 = vmatpush1.msra.mxu0 %v206
    %917 = vmatprep.subr.mxu0 0.0
    %918 = vmatpush1.msra.mxu0 %v207
    %919 = vmatprep.subr.mxu0 0.0
    %920 = vmatpush1.msra.mxu0 0.0
    %921 = vmatprep.subr.mxu0 0.0
    %922 = vmatpush1.msra.mxu0 0.0
    %923 = vmatprep.subr.mxu0 0.0
    %924 = vmatpush1.msra.mxu0 0.0
    %925 = vmatprep.subr.mxu0 0.0
    %926 = vmatpush1.msra.mxu0 0.0
    %927 = vmatprep.subr.mxu0 0.0
    %928 = vmatpush1.msra.mxu0 0.0
    %929 = vmatprep.subr.mxu0 0.0
    %930 = vmatpush1.msra.mxu0 0.0
    %931 = vmatprep.subr.mxu0 0.0
    %932 = vmatpush1.msra.mxu0 0.0
    %933 = vmatprep.subr.mxu0 0.0
    %934 = vmatpush1.msra.mxu0 0.0
    %935 = vmatprep.subr.mxu0 0.0
    %936 = vmatpush1.msra.mxu0 0.0
    %937 = vmatprep.subr.mxu0 0.0
    %938 = vmatpush1.msra.mxu0 0.0
    %939 = vmatprep.subr.mxu0 0.0
    %940 = vmatpush1.msra.mxu0 0.0
    %941 = vmatprep.subr.mxu0 0.0
    %942 = vmatpush1.msra.mxu0 0.0
    %943 = vmatprep.subr.mxu0 0.0
    %944 = vmatpush1.msra.mxu0 0.0
    %945 = vmatprep.subr.mxu0 0.0
    %946 = vmatpush1.msra.mxu0 0.0
    %947 = vmatprep.subr.mxu0 0.0
    %948 = vmatpush1.msra.mxu0 0.0
    %949 = vmatprep.subr.mxu0 0.0
    %950 = vmatpush1.msra.mxu0 0.0
    %951 = vmatprep.subr.mxu0 0.0
    %952 = vmatpush1.msra.mxu0 0.0
    %953 = vmatprep.subr.mxu0 0.0
    %954 = vmatpush1.msra.mxu0 0.0
    %955 = vmatprep.subr.mxu0 0.0
    %956 = vmatpush1.msra.mxu0 0.0
    %957 = vmatprep.subr.mxu0 0.0
    %958 = vmatpush1.msra.mxu0 0.0
    %959 = vmatprep.subr.mxu0 0.0
    %960 = vmatpush1.msra.mxu0 0.0
    %961 = vmatprep.subr.mxu0 0.0
    %962 = vmatpush1.msra.mxu0 0.0
    %963 = vmatprep.subr.mxu0 0.0
    %964 = vmatpush1.msra.mxu0 0.0
    %965 = vmatprep.subr.mxu0 0.0
    %966 = vmatpush1.msra.mxu0 0.0
    %967 = vmatprep.subr.mxu0 0.0
    %968 = vmatpush1.msra.mxu0 0.0
    %969 = vmatprep.subr.mxu0 0.0
    %970 = vmatpush1.msra.mxu0 0.0
    %971 = vmatprep.subr.mxu0 0.0
    %972 = vmatpush1.msra.mxu0 0.0
    %973 = vmatprep.subr.mxu0 0.0
    %974 = vmatpush1.msra.mxu0 0.0
    %975 = vmatprep.mubr.f32.mxu0 0.0
    %976 = vmatmul.mubr.f32.gmra.mrb[0].mxu0 %v909
    %v977 = vpop.f32.mrb[0].mxu0
    %v978 = vadd.f32 0.0, %v977
    %v979 = vpop.f32.mrb[0].mxu0
    %980 = vdwg.mxu0
    %v981 = vadd.f32 %v201, %v978
    %v982 = vxor.u32 %v981, 2147483648
    %v983 = vmul.f32 %v982, 1.442695
    %v984 = vpow.pop %v983
    %v985 = vadd.f32 %v984, 1.0
    %v986 = vrcp.pop %v985
    %v987 = vmul.f32 1.0, %v986
    %v988 = vtanh.pop %v981
    %v989 = vmul.f32 %v987, %v899
    %991 = vrot.lane.b32.xlu0 %v988, 32
    %v992 = vpop.permute.xlu0 %991
    %v994 = vmul.f32 %v987, %v992
    %996 = vrot.lane.b32.xlu0 %v994, 32
    %v997 = vpop.permute.xlu0 %996
    %v999 = vadd.f32 %v989, %v997
    %v1000 = vtanh.pop %v999
    %1002 = vrot.lane.b32.xlu0 %v1000, 32
    %v1003 = vpop.permute.xlu0 %1002
    %v1005 = vmul.f32 %v987, %v1003
    %v1006 = vtanh.pop %v1005
    %v1007 = vld [vmem:[%s4] sm:$0xff]
    %v1008 = vld [vmem:[%s4 + $0x8] sm:$0xff]
    %v1009 = vld [vmem:[%s4 + $0x10] sm:$0xff]
    %v1010 = vld [vmem:[%s4 + $0x18] sm:$0xff]
    %v1011 = vld [vmem:[%s6] sm:$0x1]
    %v1013 = vlaneseq
    %v1014 = vshrl.u32 %v1013, 7
    %v1015 = vsub.s32 0, %v1014
    %v1016 = vrot.slane %v1011, %v1015
    %1019 = vrot.lane.b32.xlu0 %v1005, 64
    %v1020 = vpop.permute.xlu0 %1019
    %v1021 = vsel %vm74, %v1020, 0
    %1023 = vmatprep.subr.mxu0 0.0
    %1024 = vmatpush1.msra.mxu0 %v1007
    %1025 = vmatprep.subr.mxu0 0.0
    %1026 = vmatpush1.msra.mxu0 %v1008
    %1027 = vmatprep.subr.mxu0 0.0
    %1028 = vmatpush1.msra.mxu0 %v1009
    %1029 = vmatprep.subr.mxu0 0.0
    %1030 = vmatpush1.msra.mxu0 %v1010
    %1031 = vmatprep.subr.mxu0 0.0
    %1032 = vmatpush1.msra.mxu0 0.0
    %1033 = vmatprep.subr.mxu0 0.0
    %1034 = vmatpush1.msra.mxu0 0.0
    %1035 = vmatprep.subr.mxu0 0.0
    %1036 = vmatpush1.msra.mxu0 0.0
    %1037 = vmatprep.subr.mxu0 0.0
    %1038 = vmatpush1.msra.mxu0 0.0
    %1039 = vmatprep.subr.mxu0 0.0
    %1040 = vmatpush1.msra.mxu0 0.0
    %1041 = vmatprep.subr.mxu0 0.0
    %1042 = vmatpush1.msra.mxu0 0.0
    %1043 = vmatprep.subr.mxu0 0.0
    %1044 = vmatpush1.msra.mxu0 0.0
    %1045 = vmatprep.subr.mxu0 0.0
    %1046 = vmatpush1.msra.mxu0 0.0
    %1047 = vmatprep.subr.mxu0 0.0
    %1048 = vmatpush1.msra.mxu0 0.0
    %1049 = vmatprep.subr.mxu0 0.0
    %1050 = vmatpush1.msra.mxu0 0.0
    %1051 = vmatprep.subr.mxu0 0.0
    %1052 = vmatpush1.msra.mxu0 0.0
    %1053 = vmatprep.subr.mxu0 0.0
    %1054 = vmatpush1.msra.mxu0 0.0
    %1055 = vmatprep.subr.mxu0 0.0
    %1056 = vmatpush1.msra.mxu0 0.0
    %1057 = vmatprep.subr.mxu0 0.0
    %1058 = vmatpush1.msra.mxu0 0.0
    %1059 = vmatprep.subr.mxu0 0.0
    %1060 = vmatpush1.msra.mxu0 0.0
    %1061 = vmatprep.subr.mxu0 0.0
    %1062 = vmatpush1.msra.mxu0 0.0
    %1063 = vmatprep.subr.mxu0 0.0
    %1064 = vmatpush1.msra.mxu0 0.0
    %1065 = vmatprep.subr.mxu0 0.0
    %1066 = vmatpush1.msra.mxu0 0.0
    %1067 = vmatprep.subr.mxu0 0.0
    %1068 = vmatpush1.msra.mxu0 0.0
    %1069 = vmatprep.subr.mxu0 0.0
    %1070 = vmatpush1.msra.mxu0 0.0
    %1071 = vmatprep.subr.mxu0 0.0
    %1072 = vmatpush1.msra.mxu0 0.0
    %1073 = vmatprep.subr.mxu0 0.0
    %1074 = vmatpush1.msra.mxu0 0.0
    %1075 = vmatprep.subr.mxu0 0.0
    %1076 = vmatpush1.msra.mxu0 0.0
    %1077 = vmatprep.subr.mxu0 0.0
    %1078 = vmatpush1.msra.mxu0 0.0
    %1079 = vmatprep.subr.mxu0 0.0
    %1080 = vmatpush1.msra.mxu0 0.0
    %1081 = vmatprep.subr.mxu0 0.0
    %1082 = vmatpush1.msra.mxu0 0.0
    %1083 = vmatprep.subr.mxu0 0.0
    %1084 = vmatpush1.msra.mxu0 0.0
    %1085 = vmatprep.subr.mxu0 0.0
    %1086 = vmatpush1.msra.mxu0 0.0
    %1087 = vmatprep.mubr.f32.mxu0 0.0
    %1088 = vmatmul.mubr.f32.gmra.mrb[0].mxu0 %v309
    %v1089 = vpop.f32.mrb[0].mxu0
    %v1090 = vadd.f32 %v1016, %v1089
    %v1091 = vpop.f32.mrb[0].mxu0
    %1092 = vmatprep.mubr.f32.mxu0 0.0
    %1093 = vmatmul.mubr.f32.gmra.mrb[0].mxu0 %v409
    %v1094 = vpop.f32.mrb[0].mxu0
    %v1095 = vadd.f32 %v1016, %v1094
    %v1096 = vpop.f32.mrb[0].mxu0
    %1097 = vmatprep.mubr.f32.mxu0 0.0
    %1098 = vmatmul.mubr.f32.gmra.mrb[0].mxu0 %v509
    %v1099 = vpop.f32.mrb[0].mxu0
    %v1100 = vadd.f32 %v1016, %v1099
    %v1101 = vpop.f32.mrb[0].mxu0
    %1102 = vmatprep.mubr.f32.mxu0 0.0
    %1103 = vmatmul.mubr.f32.gmra.mrb[0].mxu0 %v609
    %v1104 = vpop.f32.mrb[0].mxu0
    %v1105 = vadd.f32 %v1016, %v1104
    %v1106 = vpop.f32.mrb[0].mxu0
    %1107 = vmatprep.mubr.f32.mxu0 0.0
    %1108 = vmatmul.mubr.f32.gmra.mrb[0].mxu0 %v709
    %v1109 = vpop.f32.mrb[0].mxu0
    %v1110 = vadd.f32 %v1016, %v1109
    %v1111 = vpop.f32.mrb[0].mxu0
    %1112 = vmatprep.mubr.f32.mxu0 0.0
    %1113 = vmatmul.mubr.f32.gmra.mrb[0].mxu0 %v809
    %v1114 = vpop.f32.mrb[0].mxu0
    %v1115 = vadd.f32 %v1016, %v1114
    %v1116 = vpop.f32.mrb[0].mxu0
    %1117 = vmatprep.mubr.f32.mxu0 0.0
    %1118 = vmatmul.mubr.f32.gmra.mrb[0].mxu0 %v909
    %v1119 = vpop.f32.mrb[0].mxu0
    %v1120 = vadd.f32 %v1016, %v1119
    %v1121 = vpop.f32.mrb[0].mxu0
    %1122 = vmatprep.mubr.f32.mxu0 0.0
    %1123 = vmatmul.mubr.f32.gmra.mrb[0].mxu0 %v1021
    %v1124 = vpop.f32.mrb[0].mxu0
    %v1125 = vadd.f32 %v1016, %v1124
    %v1126 = vpop.f32.mrb[0].mxu0
    %1127 = vdwg.mxu0
    %v1128 = vld [vmem:[#allocation2] sm:$0xff]
    %v1129 = vld [vmem:[#allocation2 + $0x8] sm:$0xff]
    %v1130 = vld [vmem:[#allocation2 + $0x10] sm:$0xff]
    %v1131 = vld [vmem:[#allocation2 + $0x18] sm:$0xff]
    %1132 = vmatprep.subr.mxu0 0.0
    %1133 = vmatpush1.msra.mxu0 %v1128
    %1134 = vmatprep.subr.mxu0 0.0
    %1135 = vmatpush1.msra.mxu0 %v1129
    %1136 = vmatprep.subr.mxu0 0.0
    %1137 = vmatpush1.msra.mxu0 %v1130
    %1138 = vmatprep.subr.mxu0 0.0
    %1139 = vmatpush1.msra.mxu0 %v1131
    %1140 = vmatprep.subr.mxu0 0.0
    %1141 = vmatpush1.msra.mxu0 0.0
    %1142 = vmatprep.subr.mxu0 0.0
    %1143 = vmatpush1.msra.mxu0 0.0
    %1144 = vmatprep.subr.mxu0 0.0
    %1145 = vmatpush1.msra.mxu0 0.0
    %1146 = vmatprep.subr.mxu0 0.0
    %1147 = vmatpush1.msra.mxu0 0.0
    %1148 = vmatprep.subr.mxu0 0.0
    %1149 = vmatpush1.msra.mxu0 0.0
    %1150 = vmatprep.subr.mxu0 0.0
    %1151 = vmatpush1.msra.mxu0 0.0
    %1152 = vmatprep.subr.mxu0 0.0
    %1153 = vmatpush1.msra.mxu0 0.0
    %1154 = vmatprep.subr.mxu0 0.0
    %1155 = vmatpush1.msra.mxu0 0.0
    %1156 = vmatprep.subr.mxu0 0.0
    %1157 = vmatpush1.msra.mxu0 0.0
    %1158 = vmatprep.subr.mxu0 0.0
    %1159 = vmatpush1.msra.mxu0 0.0
    %1160 = vmatprep.subr.mxu0 0.0
    %1161 = vmatpush1.msra.mxu0 0.0
    %1162 = vmatprep.subr.mxu0 0.0
    %1163 = vmatpush1.msra.mxu0 0.0
    %1164 = vmatprep.subr.mxu0 0.0
    %1165 = vmatpush1.msra.mxu0 0.0
    %1166 = vmatprep.subr.mxu0 0.0
    %1167 = vmatpush1.msra.mxu0 0.0
    %1168 = vmatprep.subr.mxu0 0.0
    %1169 = vmatpush1.msra.mxu0 0.0
    %1170 = vmatprep.subr.mxu0 0.0
    %1171 = vmatpush1.msra.mxu0 0.0
    %1172 = vmatprep.subr.mxu0 0.0
    %1173 = vmatpush1.msra.mxu0 0.0
    %1174 = vmatprep.subr.mxu0 0.0
    %1175 = vmatpush1.msra.mxu0 0.0
    %1176 = vmatprep.subr.mxu0 0.0
    %1177 = vmatpush1.msra.mxu0 0.0
    %1178 = vmatprep.subr.mxu0 0.0
    %1179 = vmatpush1.msra.mxu0 0.0
    %1180 = vmatprep.subr.mxu0 0.0
    %1181 = vmatpush1.msra.mxu0 0.0
    %1182 = vmatprep.subr.mxu0 0.0
    %1183 = vmatpush1.msra.mxu0 0.0
    %1184 = vmatprep.subr.mxu0 0.0
    %1185 = vmatpush1.msra.mxu0 0.0
    %1186 = vmatprep.subr.mxu0 0.0
    %1187 = vmatpush1.msra.mxu0 0.0
    %1188 = vmatprep.subr.mxu0 0.0
    %1189 = vmatpush1.msra.mxu0 0.0
    %1190 = vmatprep.subr.mxu0 0.0
    %1191 = vmatpush1.msra.mxu0 0.0
    %1192 = vmatprep.subr.mxu0 0.0
    %1193 = vmatpush1.msra.mxu0 0.0
    %1194 = vmatprep.subr.mxu0 0.0
    %1195 = vmatpush1.msra.mxu0 0.0
    %1196 = vmatprep.mubr.f32.mxu0 0.0
    %1197 = vmatmul.mubr.f32.gmra.mrb[0].mxu0 %v209
    %v1198 = vpop.f32.mrb[0].mxu0
    %v1199 = vadd.f32 0.0, %v1198
    %v1200 = vpop.f32.mrb[0].mxu0
    %1201 = vdwg.mxu0
    %v1202 = vadd.f32 %v1090, %v1199
    %v1203 = vxor.u32 %v1202, 2147483648
    %v1204 = vmul.f32 %v1203, 1.442695
    %v1205 = vpow.pop %v1204
    %v1206 = vadd.f32 %v1205, 1.0
    %v1207 = vrcp.pop %v1206
    %v1208 = vmul.f32 1.0, %v1207
    %v1209 = vtanh.pop %v1202
    %v1210 = vmul.f32 %v1208, 0.0
    %1212 = vrot.lane.b32.xlu0 %v1209, 32
    %v1213 = vpop.permute.xlu0 %1212
    %v1215 = vmul.f32 %v1208, %v1213
    %1217 = vrot.lane.b32.xlu0 %v1215, 32
    %v1218 = vpop.permute.xlu0 %1217
    %v1220 = vadd.f32 %v1210, %v1218
    %v1221 = vtanh.pop %v1220
    %1223 = vrot.lane.b32.xlu0 %v1221, 32
    %v1224 = vpop.permute.xlu0 %1223
    %v1226 = vmul.f32 %v1208, %v1224
    %1228 = vrot.lane.b32.xlu0 %v1226, 64
    %v1229 = vpop.permute.xlu0 %1228
    %v1230 = vsel %vm74, %v1229, 0
    %1232 = vmatprep.subr.mxu0 0.0
    %1233 = vmatpush1.msra.mxu0 %v1128
    %1234 = vmatprep.subr.mxu0 0.0
    %1235 = vmatpush1.msra.mxu0 %v1129
    %1236 = vmatprep.subr.mxu0 0.0
    %1237 = vmatpush1.msra.mxu0 %v1130
    %1238 = vmatprep.subr.mxu0 0.0
    %1239 = vmatpush1.msra.mxu0 %v1131
    %1240 = vmatprep.subr.mxu0 0.0
    %1241 = vmatpush1.msra.mxu0 0.0
    %1242 = vmatprep.subr.mxu0 0.0
    %1243 = vmatpush1.msra.mxu0 0.0
    %1244 = vmatprep.subr.mxu0 0.0
    %1245 = vmatpush1.msra.mxu0 0.0
    %1246 = vmatprep.subr.mxu0 0.0
    %1247 = vmatpush1.msra.mxu0 0.0
    %1248 = vmatprep.subr.mxu0 0.0
    %1249 = vmatpush1.msra.mxu0 0.0
    %1250 = vmatprep.subr.mxu0 0.0
    %1251 = vmatpush1.msra.mxu0 0.0
    %1252 = vmatprep.subr.mxu0 0.0
    %1253 = vmatpush1.msra.mxu0 0.0
    %1254 = vmatprep.subr.mxu0 0.0
    %1255 = vmatpush1.msra.mxu0 0.0
    %1256 = vmatprep.subr.mxu0 0.0
    %1257 = vmatpush1.msra.mxu0 0.0
    %1258 = vmatprep.subr.mxu0 0.0
    %1259 = vmatpush1.msra.mxu0 0.0
    %1260 = vmatprep.subr.mxu0 0.0
    %1261 = vmatpush1.msra.mxu0 0.0
    %1262 = vmatprep.subr.mxu0 0.0
    %1263 = vmatpush1.msra.mxu0 0.0
    %1264 = vmatprep.subr.mxu0 0.0
    %1265 = vmatpush1.msra.mxu0 0.0
    %1266 = vmatprep.subr.mxu0 0.0
    %1267 = vmatpush1.msra.mxu0 0.0
    %1268 = vmatprep.subr.mxu0 0.0
    %1269 = vmatpush1.msra.mxu0 0.0
    %1270 = vmatprep.subr.mxu0 0.0
    %1271 = vmatpush1.msra.mxu0 0.0
    %1272 = vmatprep.subr.mxu0 0.0
    %1273 = vmatpush1.msra.mxu0 0.0
    %1274 = vmatprep.subr.mxu0 0.0
    %1275 = vmatpush1.msra.mxu0 0.0
    %1276 = vmatprep.subr.mxu0 0.0
    %1277 = vmatpush1.msra.mxu0 0.0
    %1278 = vmatprep.subr.mxu0 0.0
    %1279 = vmatpush1.msra.mxu0 0.0
    %1280 = vmatprep.subr.mxu0 0.0
    %1281 = vmatpush1.msra.mxu0 0.0
    %1282 = vmatprep.subr.mxu0 0.0
    %1283 = vmatpush1.msra.mxu0 0.0
    %1284 = vmatprep.subr.mxu0 0.0
    %1285 = vmatpush1.msra.mxu0 0.0
    %1286 = vmatprep.subr.mxu0 0.0
    %1287 = vmatpush1.msra.mxu0 0.0
    %1288 = vmatprep.subr.mxu0 0.0
    %1289 = vmatpush1.msra.mxu0 0.0
    %1290 = vmatprep.subr.mxu0 0.0
    %1291 = vmatpush1.msra.mxu0 0.0
    %1292 = vmatprep.subr.mxu0 0.0
    %1293 = vmatpush1.msra.mxu0 0.0
    %1294 = vmatprep.subr.mxu0 0.0
    %1295 = vmatpush1.msra.mxu0 0.0
    %1296 = vmatprep.mubr.f32.mxu0 0.0
    %1297 = vmatmul.mubr.f32.gmra.mrb[0].mxu0 %v1230
    %v1298 = vpop.f32.mrb[0].mxu0
    %v1299 = vadd.f32 0.0, %v1298
    %v1300 = vpop.f32.mrb[0].mxu0
    %1301 = vdwg.mxu0
    %v1302 = vadd.f32 %v1095, %v1299
    %v1303 = vxor.u32 %v1302, 2147483648
    %v1304 = vmul.f32 %v1303, 1.442695
    %v1305 = vpow.pop %v1304
    %v1306 = vadd.f32 %v1305, 1.0
    %v1307 = vrcp.pop %v1306
    %v1308 = vmul.f32 1.0, %v1307
    %v1309 = vtanh.pop %v1302
    %v1310 = vmul.f32 %v1308, %v1220
    %1312 = vrot.lane.b32.xlu0 %v1309, 32
    %v1313 = vpop.permute.xlu0 %1312
    %v1315 = vmul.f32 %v1308, %v1313
    %1317 = vrot.lane.b32.xlu0 %v1315, 32
    %v1318 = vpop.permute.xlu0 %1317
    %v1320 = vadd.f32 %v1310, %v1318
    %v1321 = vtanh.pop %v1320
    %1323 = vrot.lane.b32.xlu0 %v1321, 32
    %v1324 = vpop.permute.xlu0 %1323
    %v1326 = vmul.f32 %v1308, %v1324
    %1328 = vrot.lane.b32.xlu0 %v1326, 64
    %v1329 = vpop.permute.xlu0 %1328
    %v1330 = vsel %vm74, %v1329, 0
    %1332 = vmatprep.subr.mxu0 0.0
    %1333 = vmatpush1.msra.mxu0 %v1128
    %1334 = vmatprep.subr.mxu0 0.0
    %1335 = vmatpush1.msra.mxu0 %v1129
    %1336 = vmatprep.subr.mxu0 0.0
    %1337 = vmatpush1.msra.mxu0 %v1130
    %1338 = vmatprep.subr.mxu0 0.0
    %1339 = vmatpush1.msra.mxu0 %v1131
    %1340 = vmatprep.subr.mxu0 0.0
    %1341 = vmatpush1.msra.mxu0 0.0
    %1342 = vmatprep.subr.mxu0 0.0
    %1343 = vmatpush1.msra.mxu0 0.0
    %1344 = vmatprep.subr.mxu0 0.0
    %1345 = vmatpush1.msra.mxu0 0.0
    %1346 = vmatprep.subr.mxu0 0.0
    %1347 = vmatpush1.msra.mxu0 0.0
    %1348 = vmatprep.subr.mxu0 0.0
    %1349 = vmatpush1.msra.mxu0 0.0
    %1350 = vmatprep.subr.mxu0 0.0
    %1351 = vmatpush1.msra.mxu0 0.0
    %1352 = vmatprep.subr.mxu0 0.0
    %1353 = vmatpush1.msra.mxu0 0.0
    %1354 = vmatprep.subr.mxu0 0.0
    %1355 = vmatpush1.msra.mxu0 0.0
    %1356 = vmatprep.subr.mxu0 0.0
    %1357 = vmatpush1.msra.mxu0 0.0
    %1358 = vmatprep.subr.mxu0 0.0
    %1359 = vmatpush1.msra.mxu0 0.0
    %1360 = vmatprep.subr.mxu0 0.0
    %1361 = vmatpush1.msra.mxu0 0.0
    %1362 = vmatprep.subr.mxu0 0.0
    %1363 = vmatpush1.msra.mxu0 0.0
    %1364 = vmatprep.subr.mxu0 0.0
    %1365 = vmatpush1.msra.mxu0 0.0
    %1366 = vmatprep.subr.mxu0 0.0
    %1367 = vmatpush1.msra.mxu0 0.0
    %1368 = vmatprep.subr.mxu0 0.0
    %1369 = vmatpush1.msra.mxu0 0.0
    %1370 = vmatprep.subr.mxu0 0.0
    %1371 = vmatpush1.msra.mxu0 0.0
    %1372 = vmatprep.subr.mxu0 0.0
    %1373 = vmatpush1.msra.mxu0 0.0
    %1374 = vmatprep.subr.mxu0 0.0
    %1375 = vmatpush1.msra.mxu0 0.0
    %1376 = vmatprep.subr.mxu0 0.0
    %1377 = vmatpush1.msra.mxu0 0.0
    %1378 = vmatprep.subr.mxu0 0.0
    %1379 = vmatpush1.msra.mxu0 0.0
    %1380 = vmatprep.subr.mxu0 0.0
    %1381 = vmatpush1.msra.mxu0 0.0
    %1382 = vmatprep.subr.mxu0 0.0
    %1383 = vmatpush1.msra.mxu0 0.0
    %1384 = vmatprep.subr.mxu0 0.0
    %1385 = vmatpush1.msra.mxu0 0.0
    %1386 = vmatprep.subr.mxu0 0.0
    %1387 = vmatpush1.msra.mxu0 0.0
    %1388 = vmatprep.subr.mxu0 0.0
    %1389 = vmatpush1.msra.mxu0 0.0
    %1390 = vmatprep.subr.mxu0 0.0
    %1391 = vmatpush1.msra.mxu0 0.0
    %1392 = vmatprep.subr.mxu0 0.0
    %1393 = vmatpush1.msra.mxu0 0.0
    %1394 = vmatprep.subr.mxu0 0.0
    %1395 = vmatpush1.msra.mxu0 0.0
    %1396 = vmatprep.mubr.f32.mxu0 0.0
    %1397 = vmatmul.mubr.f32.gmra.mrb[0].mxu0 %v1330
    %v1398 = vpop.f32.mrb[0].mxu0
    %v1399 = vadd.f32 0.0, %v1398
    %v1400 = vpop.f32.mrb[0].mxu0
    %1401 = vdwg.mxu0
    %v1402 = vadd.f32 %v1100, %v1399
    %v1403 = vxor.u32 %v1402, 2147483648
    %v1404 = vmul.f32 %v1403, 1.442695
    %v1405 = vpow.pop %v1404
    %v1406 = vadd.f32 %v1405, 1.0
    %v1407 = vrcp.pop %v1406
    %v1408 = vmul.f32 1.0, %v1407
    %v1409 = vtanh.pop %v1402
    %v1410 = vmul.f32 %v1408, %v1320
    %1412 = vrot.lane.b32.xlu0 %v1409, 32
    %v1413 = vpop.permute.xlu0 %1412
    %v1415 = vmul.f32 %v1408, %v1413
    %1417 = vrot.lane.b32.xlu0 %v1415, 32
    %v1418 = vpop.permute.xlu0 %1417
    %v1420 = vadd.f32 %v1410, %v1418
    %v1421 = vtanh.pop %v1420
    %1423 = vrot.lane.b32.xlu0 %v1421, 32
    %v1424 = vpop.permute.xlu0 %1423
    %v1426 = vmul.f32 %v1408, %v1424
    %1428 = vrot.lane.b32.xlu0 %v1426, 64
    %v1429 = vpop.permute.xlu0 %1428
    %v1430 = vsel %vm74, %v1429, 0
    %1432 = vmatprep.subr.mxu0 0.0
    %1433 = vmatpush1.msra.mxu0 %v1128
    %1434 = vmatprep.subr.mxu0 0.0
    %1435 = vmatpush1.msra.mxu0 %v1129
    %1436 = vmatprep.subr.mxu0 0.0
    %1437 = vmatpush1.msra.mxu0 %v1130
    %1438 = vmatprep.subr.mxu0 0.0
    %1439 = vmatpush1.msra.mxu0 %v1131
    %1440 = vmatprep.subr.mxu0 0.0
    %1441 = vmatpush1.msra.mxu0 0.0
    %1442 = vmatprep.subr.mxu0 0.0
    %1443 = vmatpush1.msra.mxu0 0.0
    %1444 = vmatprep.subr.mxu0 0.0
    %1445 = vmatpush1.msra.mxu0 0.0
    %1446 = vmatprep.subr.mxu0 0.0
    %1447 = vmatpush1.msra.mxu0 0.0
    %1448 = vmatprep.subr.mxu0 0.0
    %1449 = vmatpush1.msra.mxu0 0.0
    %1450 = vmatprep.subr.mxu0 0.0
    %1451 = vmatpush1.msra.mxu0 0.0
    %1452 = vmatprep.subr.mxu0 0.0
    %1453 = vmatpush1.msra.mxu0 0.0
    %1454 = vmatprep.subr.mxu0 0.0
    %1455 = vmatpush1.msra.mxu0 0.0
    %1456 = vmatprep.subr.mxu0 0.0
    %1457 = vmatpush1.msra.mxu0 0.0
    %1458 = vmatprep.subr.mxu0 0.0
    %1459 = vmatpush1.msra.mxu0 0.0
    %1460 = vmatprep.subr.mxu0 0.0
    %1461 = vmatpush1.msra.mxu0 0.0
    %1462 = vmatprep.subr.mxu0 0.0
    %1463 = vmatpush1.msra.mxu0 0.0
    %1464 = vmatprep.subr.mxu0 0.0
    %1465 = vmatpush1.msra.mxu0 0.0
    %1466 = vmatprep.subr.mxu0 0.0
    %1467 = vmatpush1.msra.mxu0 0.0
    %1468 = vmatprep.subr.mxu0 0.0
    %1469 = vmatpush1.msra.mxu0 0.0
    %1470 = vmatprep.subr.mxu0 0.0
    %1471 = vmatpush1.msra.mxu0 0.0
    %1472 = vmatprep.subr.mxu0 0.0
    %1473 = vmatpush1.msra.mxu0 0.0
    %1474 = vmatprep.subr.mxu0 0.0
    %1475 = vmatpush1.msra.mxu0 0.0
    %1476 = vmatprep.subr.mxu0 0.0
    %1477 = vmatpush1.msra.mxu0 0.0
    %1478 = vmatprep.subr.mxu0 0.0
    %1479 = vmatpush1.msra.mxu0 0.0
    %1480 = vmatprep.subr.mxu0 0.0
    %1481 = vmatpush1.msra.mxu0 0.0
    %1482 = vmatprep.subr.mxu0 0.0
    %1483 = vmatpush1.msra.mxu0 0.0
    %1484 = vmatprep.subr.mxu0 0.0
    %1485 = vmatpush1.msra.mxu0 0.0
    %1486 = vmatprep.subr.mxu0 0.0
    %1487 = vmatpush1.msra.mxu0 0.0
    %1488 = vmatprep.subr.mxu0 0.0
    %1489 = vmatpush1.msra.mxu0 0.0
    %1490 = vmatprep.subr.mxu0 0.0
    %1491 = vmatpush1.msra.mxu0 0.0
    %1492 = vmatprep.subr.mxu0 0.0
    %1493 = vmatpush1.msra.mxu0 0.0
    %1494 = vmatprep.subr.mxu0 0.0
    %1495 = vmatpush1.msra.mxu0 0.0
    %1496 = vmatprep.mubr.f32.mxu0 0.0
    %1497 = vmatmul.mubr.f32.gmra.mrb[0].mxu0 %v1430
    %v1498 = vpop.f32.mrb[0].mxu0
    %v1499 = vadd.f32 0.0, %v1498
    %v1500 = vpop.f32.mrb[0].mxu0
    %1501 = vdwg.mxu0
    %v1502 = vadd.f32 %v1105, %v1499
    %v1503 = vxor.u32 %v1502, 2147483648
    %v1504 = vmul.f32 %v1503, 1.442695
    %v1505 = vpow.pop %v1504
    %v1506 = vadd.f32 %v1505, 1.0
    %v1507 = vrcp.pop %v1506
    %v1508 = vmul.f32 1.0, %v1507
    %v1509 = vtanh.pop %v1502
    %v1510 = vmul.f32 %v1508, %v1420
    %1512 = vrot.lane.b32.xlu0 %v1509, 32
    %v1513 = vpop.permute.xlu0 %1512
    %v1515 = vmul.f32 %v1508, %v1513
    %1517 = vrot.lane.b32.xlu0 %v1515, 32
    %v1518 = vpop.permute.xlu0 %1517
    %v1520 = vadd.f32 %v1510, %v1518
    %v1521 = vtanh.pop %v1520
    %1523 = vrot.lane.b32.xlu0 %v1521, 32
    %v1524 = vpop.permute.xlu0 %1523
    %v1526 = vmul.f32 %v1508, %v1524
    %1528 = vrot.lane.b32.xlu0 %v1526, 64
    %v1529 = vpop.permute.xlu0 %1528
    %v1530 = vsel %vm74, %v1529, 0
    %1532 = vmatprep.subr.mxu0 0.0
    %1533 = vmatpush1.msra.mxu0 %v1128
    %1534 = vmatprep.subr.mxu0 0.0
    %1535 = vmatpush1.msra.mxu0 %v1129
    %1536 = vmatprep.subr.mxu0 0.0
    %1537 = vmatpush1.msra.mxu0 %v1130
    %1538 = vmatprep.subr.mxu0 0.0
    %1539 = vmatpush1.msra.mxu0 %v1131
    %1540 = vmatprep.subr.mxu0 0.0
    %1541 = vmatpush1.msra.mxu0 0.0
    %1542 = vmatprep.subr.mxu0 0.0
    %1543 = vmatpush1.msra.mxu0 0.0
    %1544 = vmatprep.subr.mxu0 0.0
    %1545 = vmatpush1.msra.mxu0 0.0
    %1546 = vmatprep.subr.mxu0 0.0
    %1547 = vmatpush1.msra.mxu0 0.0
    %1548 = vmatprep.subr.mxu0 0.0
    %1549 = vmatpush1.msra.mxu0 0.0
    %1550 = vmatprep.subr.mxu0 0.0
    %1551 = vmatpush1.msra.mxu0 0.0
    %1552 = vmatprep.subr.mxu0 0.0
    %1553 = vmatpush1.msra.mxu0 0.0
    %1554 = vmatprep.subr.mxu0 0.0
    %1555 = vmatpush1.msra.mxu0 0.0
    %1556 = vmatprep.subr.mxu0 0.0
    %1557 = vmatpush1.msra.mxu0 0.0
    %1558 = vmatprep.subr.mxu0 0.0
    %1559 = vmatpush1.msra.mxu0 0.0
    %1560 = vmatprep.subr.mxu0 0.0
    %1561 = vmatpush1.msra.mxu0 0.0
    %1562 = vmatprep.subr.mxu0 0.0
    %1563 = vmatpush1.msra.mxu0 0.0
    %1564 = vmatprep.subr.mxu0 0.0
    %1565 = vmatpush1.msra.mxu0 0.0
    %1566 = vmatprep.subr.mxu0 0.0
    %1567 = vmatpush1.msra.mxu0 0.0
    %1568 = vmatprep.subr.mxu0 0.0
    %1569 = vmatpush1.msra.mxu0 0.0
    %1570 = vmatprep.subr.mxu0 0.0
    %1571 = vmatpush1.msra.mxu0 0.0
    %1572 = vmatprep.subr.mxu0 0.0
    %1573 = vmatpush1.msra.mxu0 0.0
    %1574 = vmatprep.subr.mxu0 0.0
    %1575 = vmatpush1.msra.mxu0 0.0
    %1576 = vmatprep.subr.mxu0 0.0
    %1577 = vmatpush1.msra.mxu0 0.0
    %1578 = vmatprep.subr.mxu0 0.0
    %1579 = vmatpush1.msra.mxu0 0.0
    %1580 = vmatprep.subr.mxu0 0.0
    %1581 = vmatpush1.msra.mxu0 0.0
    %1582 = vmatprep.subr.mxu0 0.0
    %1583 = vmatpush1.msra.mxu0 0.0
    %1584 = vmatprep.subr.mxu0 0.0
    %1585 = vmatpush1.msra.mxu0 0.0
    %1586 = vmatprep.subr.mxu0 0.0
    %1587 = vmatpush1.msra.mxu0 0.0
    %1588 = vmatprep.subr.mxu0 0.0
    %1589 = vmatpush1.msra.mxu0 0.0
    %1590 = vmatprep.subr.mxu0 0.0
    %1591 = vmatpush1.msra.mxu0 0.0
    %1592 = vmatprep.subr.mxu0 0.0
    %1593 = vmatpush1.msra.mxu0 0.0
    %1594 = vmatprep.subr.mxu0 0.0
    %1595 = vmatpush1.msra.mxu0 0.0
    %1596 = vmatprep.mubr.f32.mxu0 0.0
    %1597 = vmatmul.mubr.f32.gmra.mrb[0].mxu0 %v1530
    %v1598 = vpop.f32.mrb[0].mxu0
    %v1599 = vadd.f32 0.0, %v1598
    %v1600 = vpop.f32.mrb[0].mxu0
    %1601 = vdwg.mxu0
    %v1602 = vadd.f32 %v1110, %v1599
    %v1603 = vxor.u32 %v1602, 2147483648
    %v1604 = vmul.f32 %v1603, 1.442695
    %v1605 = vpow.pop %v1604
    %v1606 = vadd.f32 %v1605, 1.0
    %v1607 = vrcp.pop %v1606
    %v1608 = vmul.f32 1.0, %v1607
    %v1609 = vtanh.pop %v1602
    %v1610 = vmul.f32 %v1608, %v1520
    %1612 = vrot.lane.b32.xlu0 %v1609, 32
    %v1613 = vpop.permute.xlu0 %1612
    %v1615 = vmul.f32 %v1608, %v1613
    %1617 = vrot.lane.b32.xlu0 %v1615, 32
    %v1618 = vpop.permute.xlu0 %1617
    %v1620 = vadd.f32 %v1610, %v1618
    %v1621 = vtanh.pop %v1620
    %1623 = vrot.lane.b32.xlu0 %v1621, 32
    %v1624 = vpop.permute.xlu0 %1623
    %v1626 = vmul.f32 %v1608, %v1624
    %1628 = vrot.lane.b32.xlu0 %v1626, 64
    %v1629 = vpop.permute.xlu0 %1628
    %v1630 = vsel %vm74, %v1629, 0
    %1632 = vmatprep.subr.mxu0 0.0
    %1633 = vmatpush1.msra.mxu0 %v1128
    %1634 = vmatprep.subr.mxu0 0.0
    %1635 = vmatpush1.msra.mxu0 %v1129
    %1636 = vmatprep.subr.mxu0 0.0
    %1637 = vmatpush1.msra.mxu0 %v1130
    %1638 = vmatprep.subr.mxu0 0.0
    %1639 = vmatpush1.msra.mxu0 %v1131
    %1640 = vmatprep.subr.mxu0 0.0
    %1641 = vmatpush1.msra.mxu0 0.0
    %1642 = vmatprep.subr.mxu0 0.0
    %1643 = vmatpush1.msra.mxu0 0.0
    %1644 = vmatprep.subr.mxu0 0.0
    %1645 = vmatpush1.msra.mxu0 0.0
    %1646 = vmatprep.subr.mxu0 0.0
    %1647 = vmatpush1.msra.mxu0 0.0
    %1648 = vmatprep.subr.mxu0 0.0
    %1649 = vmatpush1.msra.mxu0 0.0
    %1650 = vmatprep.subr.mxu0 0.0
    %1651 = vmatpush1.msra.mxu0 0.0
    %1652 = vmatprep.subr.mxu0 0.0
    %1653 = vmatpush1.msra.mxu0 0.0
    %1654 = vmatprep.subr.mxu0 0.0
    %1655 = vmatpush1.msra.mxu0 0.0
    %1656 = vmatprep.subr.mxu0 0.0
    %1657 = vmatpush1.msra.mxu0 0.0
    %1658 = vmatprep.subr.mxu0 0.0
    %1659 = vmatpush1.msra.mxu0 0.0
    %1660 = vmatprep.subr.mxu0 0.0
    %1661 = vmatpush1.msra.mxu0 0.0
    %1662 = vmatprep.subr.mxu0 0.0
    %1663 = vmatpush1.msra.mxu0 0.0
    %1664 = vmatprep.subr.mxu0 0.0
    %1665 = vmatpush1.msra.mxu0 0.0
    %1666 = vmatprep.subr.mxu0 0.0
    %1667 = vmatpush1.msra.mxu0 0.0
    %1668 = vmatprep.subr.mxu0 0.0
    %1669 = vmatpush1.msra.mxu0 0.0
    %1670 = vmatprep.subr.mxu0 0.0
    %1671 = vmatpush1.msra.mxu0 0.0
    %1672 = vmatprep.subr.mxu0 0.0
    %1673 = vmatpush1.msra.mxu0 0.0
    %1674 = vmatprep.subr.mxu0 0.0
    %1675 = vmatpush1.msra.mxu0 0.0
    %1676 = vmatprep.subr.mxu0 0.0
    %1677 = vmatpush1.msra.mxu0 0.0
    %1678 = vmatprep.subr.mxu0 0.0
    %1679 = vmatpush1.msra.mxu0 0.0
    %1680 = vmatprep.subr.mxu0 0.0
    %1681 = vmatpush1.msra.mxu0 0.0
    %1682 = vmatprep.subr.mxu0 0.0
    %1683 = vmatpush1.msra.mxu0 0.0
    %1684 = vmatprep.subr.mxu0 0.0
    %1685 = vmatpush1.msra.mxu0 0.0
    %1686 = vmatprep.subr.mxu0 0.0
    %1687 = vmatpush1.msra.mxu0 0.0
    %1688 = vmatprep.subr.mxu0 0.0
    %1689 = vmatpush1.msra.mxu0 0.0
    %1690 = vmatprep.subr.mxu0 0.0
    %1691 = vmatpush1.msra.mxu0 0.0
    %1692 = vmatprep.subr.mxu0 0.0
    %1693 = vmatpush1.msra.mxu0 0.0
    %1694 = vmatprep.subr.mxu0 0.0
    %1695 = vmatpush1.msra.mxu0 0.0
    %1696 = vmatprep.mubr.f32.mxu0 0.0
    %1697 = vmatmul.mubr.f32.gmra.mrb[0].mxu0 %v1630
    %v1698 = vpop.f32.mrb[0].mxu0
    %v1699 = vadd.f32 0.0, %v1698
    %v1700 = vpop.f32.mrb[0].mxu0
    %1701 = vdwg.mxu0
    %v1702 = vadd.f32 %v1115, %v1699
    %v1703 = vxor.u32 %v1702, 2147483648
    %v1704 = vmul.f32 %v1703, 1.442695
    %v1705 = vpow.pop %v1704
    %v1706 = vadd.f32 %v1705, 1.0
    %v1707 = vrcp.pop %v1706
    %v1708 = vmul.f32 1.0, %v1707
    %v1709 = vtanh.pop %v1702
    %v1710 = vmul.f32 %v1708, %v1620
    %1712 = vrot.lane.b32.xlu0 %v1709, 32
    %v1713 = vpop.permute.xlu0 %1712
    %v1715 = vmul.f32 %v1708, %v1713
    %1717 = vrot.lane.b32.xlu0 %v1715, 32
    %v1718 = vpop.permute.xlu0 %1717
    %v1720 = vadd.f32 %v1710, %v1718
    %v1721 = vtanh.pop %v1720
    %1723 = vrot.lane.b32.xlu0 %v1721, 32
    %v1724 = vpop.permute.xlu0 %1723
    %v1726 = vmul.f32 %v1708, %v1724
    %1728 = vrot.lane.b32.xlu0 %v1726, 64
    %v1729 = vpop.permute.xlu0 %1728
    %v1730 = vsel %vm74, %v1729, 0
    %1732 = vmatprep.subr.mxu0 0.0
    %1733 = vmatpush1.msra.mxu0 %v1128
    %1734 = vmatprep.subr.mxu0 0.0
    %1735 = vmatpush1.msra.mxu0 %v1129
    %1736 = vmatprep.subr.mxu0 0.0
    %1737 = vmatpush1.msra.mxu0 %v1130
    %1738 = vmatprep.subr.mxu0 0.0
    %1739 = vmatpush1.msra.mxu0 %v1131
    %1740 = vmatprep.subr.mxu0 0.0
    %1741 = vmatpush1.msra.mxu0 0.0
    %1742 = vmatprep.subr.mxu0 0.0
    %1743 = vmatpush1.msra.mxu0 0.0
    %1744 = vmatprep.subr.mxu0 0.0
    %1745 = vmatpush1.msra.mxu0 0.0
    %1746 = vmatprep.subr.mxu0 0.0
    %1747 = vmatpush1.msra.mxu0 0.0
    %1748 = vmatprep.subr.mxu0 0.0
    %1749 = vmatpush1.msra.mxu0 0.0
    %1750 = vmatprep.subr.mxu0 0.0
    %1751 = vmatpush1.msra.mxu0 0.0
    %1752 = vmatprep.subr.mxu0 0.0
    %1753 = vmatpush1.msra.mxu0 0.0
    %1754 = vmatprep.subr.mxu0 0.0
    %1755 = vmatpush1.msra.mxu0 0.0
    %1756 = vmatprep.subr.mxu0 0.0
    %1757 = vmatpush1.msra.mxu0 0.0
    %1758 = vmatprep.subr.mxu0 0.0
    %1759 = vmatpush1.msra.mxu0 0.0
    %1760 = vmatprep.subr.mxu0 0.0
    %1761 = vmatpush1.msra.mxu0 0.0
    %1762 = vmatprep.subr.mxu0 0.0
    %1763 = vmatpush1.msra.mxu0 0.0
    %1764 = vmatprep.subr.mxu0 0.0
    %1765 = vmatpush1.msra.mxu0 0.0
    %1766 = vmatprep.subr.mxu0 0.0
    %1767 = vmatpush1.msra.mxu0 0.0
    %1768 = vmatprep.subr.mxu0 0.0
    %1769 = vmatpush1.msra.mxu0 0.0
    %1770 = vmatprep.subr.mxu0 0.0
    %1771 = vmatpush1.msra.mxu0 0.0
    %1772 = vmatprep.subr.mxu0 0.0
    %1773 = vmatpush1.msra.mxu0 0.0
    %1774 = vmatprep.subr.mxu0 0.0
    %1775 = vmatpush1.msra.mxu0 0.0
    %1776 = vmatprep.subr.mxu0 0.0
    %1777 = vmatpush1.msra.mxu0 0.0
    %1778 = vmatprep.subr.mxu0 0.0
    %1779 = vmatpush1.msra.mxu0 0.0
    %1780 = vmatprep.subr.mxu0 0.0
    %1781 = vmatpush1.msra.mxu0 0.0
    %1782 = vmatprep.subr.mxu0 0.0
    %1783 = vmatpush1.msra.mxu0 0.0
    %1784 = vmatprep.subr.mxu0 0.0
    %1785 = vmatpush1.msra.mxu0 0.0
    %1786 = vmatprep.subr.mxu0 0.0
    %1787 = vmatpush1.msra.mxu0 0.0
    %1788 = vmatprep.subr.mxu0 0.0
    %1789 = vmatpush1.msra.mxu0 0.0
    %1790 = vmatprep.subr.mxu0 0.0
    %1791 = vmatpush1.msra.mxu0 0.0
    %1792 = vmatprep.subr.mxu0 0.0
    %1793 = vmatpush1.msra.mxu0 0.0
    %1794 = vmatprep.subr.mxu0 0.0
    %1795 = vmatpush1.msra.mxu0 0.0
    %1796 = vmatprep.mubr.f32.mxu0 0.0
    %1797 = vmatmul.mubr.f32.gmra.mrb[0].mxu0 %v1730
    %v1798 = vpop.f32.mrb[0].mxu0
    %v1799 = vadd.f32 0.0, %v1798
    %v1800 = vpop.f32.mrb[0].mxu0
    %1801 = vdwg.mxu0
    %v1802 = vadd.f32 %v1120, %v1799
    %v1803 = vxor.u32 %v1802, 2147483648
    %v1804 = vmul.f32 %v1803, 1.442695
    %v1805 = vpow.pop %v1804
    %v1806 = vadd.f32 %v1805, 1.0
    %v1807 = vrcp.pop %v1806
    %v1808 = vmul.f32 1.0, %v1807
    %v1809 = vtanh.pop %v1802
    %v1810 = vmul.f32 %v1808, %v1720
    %1812 = vrot.lane.b32.xlu0 %v1809, 32
    %v1813 = vpop.permute.xlu0 %1812
    %v1815 = vmul.f32 %v1808, %v1813
    %1817 = vrot.lane.b32.xlu0 %v1815, 32
    %v1818 = vpop.permute.xlu0 %1817
    %v1820 = vadd.f32 %v1810, %v1818
    %v1821 = vtanh.pop %v1820
    %1823 = vrot.lane.b32.xlu0 %v1821, 32
    %v1824 = vpop.permute.xlu0 %1823
    %v1826 = vmul.f32 %v1808, %v1824
    %1828 = vrot.lane.b32.xlu0 %v1826, 64
    %v1829 = vpop.permute.xlu0 %1828
    %v1830 = vsel %vm74, %v1829, 0
    %1832 = vmatprep.subr.mxu0 0.0
    %1833 = vmatpush1.msra.mxu0 %v1128
    %1834 = vmatprep.subr.mxu0 0.0
    %1835 = vmatpush1.msra.mxu0 %v1129
    %1836 = vmatprep.subr.mxu0 0.0
    %1837 = vmatpush1.msra.mxu0 %v1130
    %1838 = vmatprep.subr.mxu0 0.0
    %1839 = vmatpush1.msra.mxu0 %v1131
    %1840 = vmatprep.subr.mxu0 0.0
    %1841 = vmatpush1.msra.mxu0 0.0
    %1842 = vmatprep.subr.mxu0 0.0
    %1843 = vmatpush1.msra.mxu0 0.0
    %1844 = vmatprep.subr.mxu0 0.0
    %1845 = vmatpush1.msra.mxu0 0.0
    %1846 = vmatprep.subr.mxu0 0.0
    %1847 = vmatpush1.msra.mxu0 0.0
    %1848 = vmatprep.subr.mxu0 0.0
    %1849 = vmatpush1.msra.mxu0 0.0
    %1850 = vmatprep.subr.mxu0 0.0
    %1851 = vmatpush1.msra.mxu0 0.0
    %1852 = vmatprep.subr.mxu0 0.0
    %1853 = vmatpush1.msra.mxu0 0.0
    %1854 = vmatprep.subr.mxu0 0.0
    %1855 = vmatpush1.msra.mxu0 0.0
    %1856 = vmatprep.subr.mxu0 0.0
    %1857 = vmatpush1.msra.mxu0 0.0
    %1858 = vmatprep.subr.mxu0 0.0
    %1859 = vmatpush1.msra.mxu0 0.0
    %1860 = vmatprep.subr.mxu0 0.0
    %1861 = vmatpush1.msra.mxu0 0.0
    %1862 = vmatprep.subr.mxu0 0.0
    %1863 = vmatpush1.msra.mxu0 0.0
    %1864 = vmatprep.subr.mxu0 0.0
    %1865 = vmatpush1.msra.mxu0 0.0
    %1866 = vmatprep.subr.mxu0 0.0
    %1867 = vmatpush1.msra.mxu0 0.0
    %1868 = vmatprep.subr.mxu0 0.0
    %1869 = vmatpush1.msra.mxu0 0.0
    %1870 = vmatprep.subr.mxu0 0.0
    %1871 = vmatpush1.msra.mxu0 0.0
    %1872 = vmatprep.subr.mxu0 0.0
    %1873 = vmatpush1.msra.mxu0 0.0
    %1874 = vmatprep.subr.mxu0 0.0
    %1875 = vmatpush1.msra.mxu0 0.0
    %1876 = vmatprep.subr.mxu0 0.0
    %1877 = vmatpush1.msra.mxu0 0.0
    %1878 = vmatprep.subr.mxu0 0.0
    %1879 = vmatpush1.msra.mxu0 0.0
    %1880 = vmatprep.subr.mxu0 0.0
    %1881 = vmatpush1.msra.mxu0 0.0
    %1882 = vmatprep.subr.mxu0 0.0
    %1883 = vmatpush1.msra.mxu0 0.0
    %1884 = vmatprep.subr.mxu0 0.0
    %1885 = vmatpush1.msra.mxu0 0.0
    %1886 = vmatprep.subr.mxu0 0.0
    %1887 = vmatpush1.msra.mxu0 0.0
    %1888 = vmatprep.subr.mxu0 0.0
    %1889 = vmatpush1.msra.mxu0 0.0
    %1890 = vmatprep.subr.mxu0 0.0
    %1891 = vmatpush1.msra.mxu0 0.0
    %1892 = vmatprep.subr.mxu0 0.0
    %1893 = vmatpush1.msra.mxu0 0.0
    %1894 = vmatprep.subr.mxu0 0.0
    %1895 = vmatpush1.msra.mxu0 0.0
    %1896 = vmatprep.mubr.f32.mxu0 0.0
    %1897 = vmatmul.mubr.f32.gmra.mrb[0].mxu0 %v1830
    %v1898 = vpop.f32.mrb[0].mxu0
    %v1899 = vadd.f32 0.0, %v1898
    %v1900 = vpop.f32.mrb[0].mxu0
    %1901 = vdwg.mxu0
    %v1902 = vadd.f32 %v1125, %v1899
    %v1903 = vxor.u32 %v1902, 2147483648
    %v1904 = vmul.f32 %v1903, 1.442695
    %v1905 = vpow.pop %v1904
    %v1906 = vadd.f32 %v1905, 1.0
    %v1907 = vrcp.pop %v1906
    %v1908 = vmul.f32 1.0, %v1907
    %v1909 = vtanh.pop %v1902
    %v1910 = vmul.f32 %v1908, %v1820
    %1912 = vrot.lane.b32.xlu0 %v1909, 32
    %v1913 = vpop.permute.xlu0 %1912
    %v1915 = vmul.f32 %v1908, %v1913
    %1917 = vrot.lane.b32.xlu0 %v1915, 32
    %v1918 = vpop.permute.xlu0 %1917
    %v1920 = vadd.f32 %v1910, %v1918
    %v1921 = vtanh.pop %v1920
    %1923 = vrot.lane.b32.xlu0 %v1921, 32
    %v1924 = vpop.permute.xlu0 %1923
    %v1926 = vmul.f32 %v1908, %v1924
    %v1927 = vtanh.pop %v1926
    %1929 = vrot.lane.b32.xlu0 %v1006, 64
    %v1930 = vpop.permute.xlu0 %1929
    %1932 = vrot.lane.b32.xlu0 %v1921, 64
    %v1933 = vpop.permute.xlu0 %1932
    %v1935 = vsel %vm74, %v1930, %v1000
    %vm1936 = vcmask 523264
    %v1937 = vsel %vm1936, %v1935, %v1927
    %vm1938 = vcmask 785408
    %v1939 = vsel %vm1938, %v1937, %v1933
    %v1940 = vld [vmem:[%s7] sm:$0xff]
    %v1941 = vld [vmem:[%s7 + $0x8] sm:$0xff]
    %v1942 = vld [vmem:[%s7 + $0x10] sm:$0xff]
    %v1943 = vld [vmem:[%s7 + $0x18] sm:$0xff]
    %v1944 = vld [vmem:[%s7 + $0x20] sm:$0xff]
    %v1945 = vld [vmem:[%s7 + $0x28] sm:$0xff]
    %v1946 = vld [vmem:[%s7 + $0x30] sm:$0xff]
    %v1947 = vld [vmem:[%s7 + $0x38] sm:$0xff]
    %v1948 = vld [vmem:[%s7 + $0x40] sm:$0xff]
    %v1949 = vld [vmem:[%s7 + $0x48] sm:$0xff]
    %v1950 = vld [vmem:[%s7 + $0x50] sm:$0xff]
    %v1951 = vld [vmem:[%s7 + $0x58] sm:$0xff]
    %v1952 = vld [vmem:[%s7 + $0x60] sm:$0xff]
    %v1953 = vld [vmem:[%s7 + $0x68] sm:$0xff]
    %v1954 = vld [vmem:[%s7 + $0x70] sm:$0xff]
    %v1955 = vld [vmem:[%s7 + $0x78] sm:$0xff]
    %v1956 = vld [vmem:[%s8] sm:$0x1]
    %v1958 = vlaneseq
    %v1959 = vshrl.u32 %v1958, 7
    %v1960 = vsub.s32 0, %v1959
    %v1961 = vrot.slane %v1956, %v1960
    %1963 = vmatprep.subr.mxu0 0.0
    %1964 = vmatpush1.msra.mxu0 %v1940
    %1965 = vmatprep.subr.mxu0 0.0
    %1966 = vmatpush1.msra.mxu0 %v1941
    %1967 = vmatprep.subr.mxu0 0.0
    %1968 = vmatpush1.msra.mxu0 %v1942
    %1969 = vmatprep.subr.mxu0 0.0
    %1970 = vmatpush1.msra.mxu0 %v1943
    %1971 = vmatprep.subr.mxu0 0.0
    %1972 = vmatpush1.msra.mxu0 %v1944
    %1973 = vmatprep.subr.mxu0 0.0
    %1974 = vmatpush1.msra.mxu0 %v1945
    %1975 = vmatprep.subr.mxu0 0.0
    %1976 = vmatpush1.msra.mxu0 %v1946
    %1977 = vmatprep.subr.mxu0 0.0
    %1978 = vmatpush1.msra.mxu0 %v1947
    %1979 = vmatprep.subr.mxu0 0.0
    %1980 = vmatpush1.msra.mxu0 %v1948
    %1981 = vmatprep.subr.mxu0 0.0
    %1982 = vmatpush1.msra.mxu0 %v1949
    %1983 = vmatprep.subr.mxu0 0.0
    %1984 = vmatpush1.msra.mxu0 %v1950
    %1985 = vmatprep.subr.mxu0 0.0
    %1986 = vmatpush1.msra.mxu0 %v1951
    %1987 = vmatprep.subr.mxu0 0.0
    %1988 = vmatpush1.msra.mxu0 %v1952
    %1989 = vmatprep.subr.mxu0 0.0
    %1990 = vmatpush1.msra.mxu0 %v1953
    %1991 = vmatprep.subr.mxu0 0.0
    %1992 = vmatpush1.msra.mxu0 %v1954
    %1993 = vmatprep.subr.mxu0 0.0
    %1994 = vmatpush1.msra.mxu0 %v1955
    %1995 = vmatprep.subr.mxu0 0.0
    %1996 = vmatpush1.msra.mxu0 0.0
    %1997 = vmatprep.subr.mxu0 0.0
    %1998 = vmatpush1.msra.mxu0 0.0
    %1999 = vmatprep.subr.mxu0 0.0
    %2000 = vmatpush1.msra.mxu0 0.0
    %2001 = vmatprep.subr.mxu0 0.0
    %2002 = vmatpush1.msra.mxu0 0.0
    %2003 = vmatprep.subr.mxu0 0.0
    %2004 = vmatpush1.msra.mxu0 0.0
    %2005 = vmatprep.subr.mxu0 0.0
    %2006 = vmatpush1.msra.mxu0 0.0
    %2007 = vmatprep.subr.mxu0 0.0
    %2008 = vmatpush1.msra.mxu0 0.0
    %2009 = vmatprep.subr.mxu0 0.0
    %2010 = vmatpush1.msra.mxu0 0.0
    %2011 = vmatprep.subr.mxu0 0.0
    %2012 = vmatpush1.msra.mxu0 0.0
    %2013 = vmatprep.subr.mxu0 0.0
    %2014 = vmatpush1.msra.mxu0 0.0
    %2015 = vmatprep.subr.mxu0 0.0
    %2016 = vmatpush1.msra.mxu0 0.0
    %2017 = vmatprep.subr.mxu0 0.0
    %2018 = vmatpush1.msra.mxu0 0.0
    %2019 = vmatprep.subr.mxu0 0.0
    %2020 = vmatpush1.msra.mxu0 0.0
    %2021 = vmatprep.subr.mxu0 0.0
    %2022 = vmatpush1.msra.mxu0 0.0
    %2023 = vmatprep.subr.mxu0 0.0
    %2024 = vmatpush1.msra.mxu0 0.0
    %2025 = vmatprep.subr.mxu0 0.0
    %2026 = vmatpush1.msra.mxu0 0.0
    %2027 = vmatprep.mubr.f32.mxu0 0.0
    %2028 = vmatmul.mubr.f32.gmra.mrb[0].mxu0 %v1939
    %v2029 = vpop.f32.mrb[0].mxu0
    %v2030 = vadd.f32 %v1961, %v2029
    %v2031 = vpop.f32.mrb[0].mxu0
    %2032 = vdwg.mxu0
    %2033 = vst.msk [vmem:[#allocation5] sm:$0xff] %vm74, %v2030
    // Predicated region
    $region42: #{tpu_custom_call.1} parent=1 // pred_check
      _
    $region43: #{tpu_custom_call.1} parent=1 // pred_check_branch
      %2035 = sbr.rel (0) target = $region45
    $region44: #{tpu_custom_call.1} parent=1 // pred_region
      %s2037 = ssub.s32 128, 128
      %2038 = vsyncadd [#allocation4], %s2037
      %s2040 = sshll.u32 [#allocation5], 4
      %s2041 = int_to_ptr.vmem [resolvable:$true] %s2040
      %2043 = dma.vmem_to_hbm [thread:$0]  %s2041, 128, %s9, [#allocation4]
    $region45: #{tpu_custom_call.1} parent=1 // pred_fallthru
      _
    // Predicated region
    $region46: #{tpu_custom_call.1} parent=1 // pred_check
      _
    $region47: #{tpu_custom_call.1} parent=1 // pred_check_branch
      %2045 = sbr.rel (0) target = $region49
    $region48: #{tpu_custom_call.1} parent=1 // pred_region
      %2046 = dma.done [#allocation4], 128
    $region49: #{tpu_custom_call.1} parent=1 // pred_fallthru
      _
    %2047 = vsyncpa [#allocation3], 1
    %2048 = vsyncpa [#allocation4], 1

</llo_original>
